<compile_context>
chip_gen: v5e
topology: v5e:2x2
jax: 0.10.0
libtpu: 0.0.40
codegen_flags: <defaults>
</compile_context>

<pallas_src>
import functools

import jax
import jax.numpy as jnp
from jax import lax
from jax.experimental import pallas as pl
from jax.experimental.pallas import tpu as pltpu

KERNEL_MUL = 2.0
KERNEL_NUM = 5


# ------------------------------ fused kernel --------------------------------

def fused_transfernet_kernel(labels_ref,                 # SMEM (B,) int32 (scalar prefetch)
                             x_ref,                      # [2B, chw]  bf16
                             base_w_ref, base_b_ref,     # [chw, F] bf16, [1, F] f32
                             bott_w_ref, bott_b_ref,     # [F, D]  bf16, [1, D] f32
                             clf_w_ref, clf_b_ref,       # [D, C]  bf16, [1, C] f32
                             loss_ref,                   # [1, 1]  f32
                             tf_ref,                     # [B, F]  f32
                             tlv_ref,                    # [B, 1]  f32
                             tli_ref,                    # [B, 1]  int32
                             *, batch):
    B = batch
    f32 = jnp.float32

    # ---- backbone proxy: Linear + ReLU on batched [2B, chw] ----
    f = jnp.dot(x_ref[...], base_w_ref[...], preferred_element_type=f32)
    f = jnp.maximum(f + base_b_ref[...], 0.0)                       # [2B, F]

    # ---- bottleneck_layer: Linear + ReLU (shared for source & target) ----
    b = jnp.dot(f.astype(jnp.bfloat16), bott_w_ref[...],
                preferred_element_type=f32)
    b = jnp.maximum(b + bott_b_ref[...], 0.0)                       # [2B, D]

    # ---- source classifier applied to both halves ----
    logits = jnp.dot(b.astype(jnp.bfloat16), clf_w_ref[...],
                     preferred_element_type=f32) + clf_b_ref[...]   # [2B, C]
    src_logits = logits[:B, :]
    tgt_logits = logits[B:, :]
    nc = logits.shape[-1]

    # ---- fused target softmax .max(1): values + first-occurrence argmax ----
    tgt_m = jnp.max(tgt_logits, axis=-1, keepdims=True)             # [B, 1]
    tgt_lse = jnp.log(jnp.sum(jnp.exp(tgt_logits - tgt_m),
                              axis=-1, keepdims=True)) + tgt_m
    tlv_ref[...] = jnp.exp(tgt_m - tgt_lse)                         # max(softmax)
    col = lax.broadcasted_iota(jnp.int32, tgt_logits.shape, 1)
    first_max = jnp.min(jnp.where(tgt_logits >= tgt_m, col, nc),
                        axis=-1, keepdims=True)
    tli_ref[...] = first_max.astype(jnp.int32)

    # ---- source cross-entropy (labels from SMEM, one-hot via iota compare) ----
    src_m = jnp.max(src_logits, axis=-1, keepdims=True)
    src_lse = jnp.log(jnp.sum(jnp.exp(src_logits - src_m),
                              axis=-1, keepdims=True)) + src_m
    logp = src_logits - src_lse                                     # [B, C]
    ids = lax.broadcasted_iota(jnp.int32, (1, nc), 1)
    ce = f32(0.0)
    for i in range(B):                                              # B static & tiny
        lab = labels_ref[i]
        row = logp[i:i + 1, :]
        ce = ce - jnp.sum(jnp.where(ids == lab, row, 0.0))
    ce = ce / f32(B)

    # ---- multi-bandwidth gaussian MMD on bottleneck features (f32 gram) ----
    n = 2 * B
    t2 = b * b
    sq_col = jnp.sum(t2, axis=-1, keepdims=True)                    # [2B, 1]
    ones_row = jnp.ones((1, t2.shape[-1]), f32)
    sq_row = lax.dot_general(ones_row, t2, (((1,), (1,)), ((), ())),
                             preferred_element_type=f32)            # [1, 2B]
    gram = lax.dot_general(b, b, (((1,), (1,)), ((), ())),
                           preferred_element_type=f32)              # [2B, 2B]
    d2 = jnp.maximum(sq_col + sq_row - 2.0 * gram, 0.0)
    bandwidth = jnp.sum(d2) / f32(n * n - n)
    bandwidth = bandwidth / (KERNEL_MUL ** (KERNEL_NUM // 2))
    k = jnp.zeros_like(d2)
    for i in range(KERNEL_NUM):
        k = k + jnp.exp(-d2 / (bandwidth * (KERNEL_MUL ** i)))
    mmd = (jnp.mean(k[:B, :B]) + jnp.mean(k[B:, B:])
           - jnp.mean(k[:B, B:]) - jnp.mean(k[B:, :B]))

    loss_ref[...] = (ce + mmd).reshape(1, 1)
    tf_ref[...] = f[B:, :]                                          # target_f


# ------------------------------ forward wrapper ------------------------------

@jax.jit
def transfernet_forward(params, source, target, labels):
    B = source.shape[0]
    feat_dim = params["base_w"].shape[1]

    x = jnp.concatenate([source.reshape(B, -1), target.reshape(B, -1)], axis=0)
    x_bf16 = x.astype(jnp.bfloat16)
    base_w = params["base_w"].astype(jnp.bfloat16)
    bott_w = params["bott_w"].astype(jnp.bfloat16)
    clf_w = params["src_clf_w"].astype(jnp.bfloat16)

    def full(shape):
        return pl.BlockSpec(shape, lambda i, lab, _s=shape: tuple(0 for _ in _s))

    grid_spec = pltpu.PrefetchScalarGridSpec(
        num_scalar_prefetch=1,
        grid=(1,),
        in_specs=[
            full(x_bf16.shape),
            full(base_w.shape), full(params["base_b"].shape),
            full(bott_w.shape), full(params["bott_b"].shape),
            full(clf_w.shape), full(params["src_clf_b"].shape),
        ],
        out_specs=(
            full((1, 1)),
            full((B, feat_dim)),
            full((B, 1)),
            full((B, 1)),
        ),
    )
    out_shape = (
        jax.ShapeDtypeStruct((1, 1), jnp.float32),
        jax.ShapeDtypeStruct((B, feat_dim), jnp.float32),
        jax.ShapeDtypeStruct((B, 1), jnp.float32),
        jax.ShapeDtypeStruct((B, 1), jnp.int32),
    )

    loss, target_f, tl_vals, tl_idx = pl.pallas_call(
        functools.partial(fused_transfernet_kernel, batch=B),
        grid_spec=grid_spec,
        out_shape=out_shape,
        compiler_params=pltpu.CompilerParams(
            dimension_semantics=("arbitrary",)),
    )(labels, x_bf16, base_w, params["base_b"], bott_w, params["bott_b"],
      clf_w, params["src_clf_b"])

    # torch .max(1) -> (values, indices); target_f is detached (forward only)
    return loss[0, 0], target_f, (tl_vals[:, 0], tl_idx[:, 0])


# --------------------------------- params -----------------------------------

def init_params(key, chw, feat_dim, bottleneck_width, num_class):
    ks = jax.random.split(key, 8)

    def lin(kw, kb, fan_in, fan_out):
        bound = 1.0 / jnp.sqrt(fan_in)
        w = jax.random.uniform(kw, (fan_in, fan_out), jnp.float32, -bound, bound)
        b = jax.random.uniform(kb, (1, fan_out), jnp.float32, -bound, bound)
        return w, b

    p = {}
    p["base_w"], p["base_b"] = lin(ks[0], ks[1], chw, feat_dim)
    p["bott_w"], p["bott_b"] = lin(ks[2], ks[3], feat_dim, bottleneck_width)
    p["src_clf_w"], p["src_clf_b"] = lin(ks[4], ks[5], bottleneck_width, num_class)
    p["tgt_clf_w"], p["tgt_clf_b"] = lin(ks[6], ks[7], bottleneck_width, num_class)
    return p


# -------------------------------- reference ----------------------------------

def reference_forward(params, source, target, labels):
    B = source.shape[0]
    f32 = jnp.float32
    x = jnp.concatenate([source.reshape(B, -1), target.reshape(B, -1)],
                        axis=0).astype(jnp.bfloat16)
    f = jnp.maximum(jnp.dot(x, params["base_w"].astype(jnp.bfloat16),
                            preferred_element_type=f32) + params["base_b"], 0.0)
    b = jnp.maximum(jnp.dot(f.astype(jnp.bfloat16),
                            params["bott_w"].astype(jnp.bfloat16),
                            preferred_element_type=f32) + params["bott_b"], 0.0)
    logits = jnp.dot(b.astype(jnp.bfloat16),
                     params["src_clf_w"].astype(jnp.bfloat16),
                     preferred_element_type=f32) + params["src_clf_b"]
    src_logits, tgt_logits = logits[:B], logits[B:]

    logp = jax.nn.log_softmax(src_logits, axis=-1)
    ce = -jnp.mean(logp[jnp.arange(B), labels])

    n = 2 * B
    sq = jnp.sum(b * b, axis=-1, keepdims=True)
    d2 = jnp.maximum(sq + sq.T - 2.0 * (b @ b.T), 0.0)
    bw = jnp.sum(d2) / (n * n - n) / (KERNEL_MUL ** (KERNEL_NUM // 2))
    k = sum(jnp.exp(-d2 / (bw * KERNEL_MUL ** i)) for i in range(KERNEL_NUM))
    mmd = (jnp.mean(k[:B, :B]) + jnp.mean(k[B:, B:])
           - jnp.mean(k[:B, B:]) - jnp.mean(k[B:, :B]))

    sm = jax.nn.softmax(tgt_logits, axis=-1)
    return ce + mmd, f[B:], (jnp.max(sm, axis=-1), jnp.argmax(sm, axis=-1))


# ----------------------------------- main ------------------------------------

if __name__ == "__main__":
    B, C, H, W = 2, 4, 16, 16
    feat_dim, bottleneck_width, num_class = 128, 128, 8

    key = jax.random.PRNGKey(0)
    k_src, k_tgt, k_lab, k_par = jax.random.split(key, 4)
    source = jax.random.normal(k_src, (B, C, H, W), jnp.float32)
    target = jax.random.normal(k_tgt, (B, C, H, W), jnp.float32)
    labels = jax.random.randint(k_lab, (B,), 0, num_class, jnp.int32)
    params = init_params(k_par, C * H * W, feat_dim, bottleneck_width, num_class)

    source_loss, target_f, (tl_vals, tl_idx) = transfernet_forward(
        params, source, target, labels)
    jax.block_until_ready((source_loss, target_f, tl_vals, tl_idx))

    ref_loss, ref_tf, (ref_vals, ref_idx) = reference_forward(
        params, source, target, labels)

    assert jnp.allclose(source_loss, ref_loss, atol=2e-3, rtol=2e-3), (
        source_loss, ref_loss)
    assert jnp.allclose(target_f, ref_tf, atol=2e-3, rtol=2e-3)
    assert jnp.allclose(tl_vals, ref_vals, atol=2e-3, rtol=2e-3)
    assert jnp.array_equal(tl_idx.astype(jnp.int32), ref_idx.astype(jnp.int32))

    print("KERNEL_OK")
</pallas_src>

<mosaic_0001>
module attributes {stable_mosaic.version = 11 : i64} {
  func.func @fused_transfernet_kernel(%arg0: i32, %arg1: memref<2xi32, #tpu.memory_space<smem>>, %arg2: memref<4x1024xbf16, #tpu.memory_space<vmem>>, %arg3: memref<1024x128xbf16, #tpu.memory_space<vmem>>, %arg4: memref<1x128xf32, #tpu.memory_space<vmem>>, %arg5: memref<128x128xbf16, #tpu.memory_space<vmem>>, %arg6: memref<1x128xf32, #tpu.memory_space<vmem>>, %arg7: memref<128x8xbf16, #tpu.memory_space<vmem>>, %arg8: memref<1x8xf32, #tpu.memory_space<vmem>>, %arg9: memref<1x1xf32, #tpu.memory_space<vmem>>, %arg10: memref<2x128xf32, #tpu.memory_space<vmem>>, %arg11: memref<2x1xf32, #tpu.memory_space<vmem>>, %arg12: memref<2x1xi32, #tpu.memory_space<vmem>>) attributes {dimension_semantics = [#tpu.dimension_semantics<arbitrary>], iteration_bounds = array<i64: 1>, scalar_prefetch = 1 : i64, scratch_operands = 0 : i64, tpu.core_type = #tpu.core_type<tc>, window_params = [{pipeline_mode = #tpu.pipeline_mode<synchronous>, transform_indices = @transform_0, window_bounds = array<i64: 4, 1024>}, {pipeline_mode = #tpu.pipeline_mode<synchronous>, transform_indices = @transform_1, window_bounds = array<i64: 1024, 128>}, {pipeline_mode = #tpu.pipeline_mode<synchronous>, transform_indices = @transform_2, window_bounds = array<i64: 1, 128>}, {pipeline_mode = #tpu.pipeline_mode<synchronous>, transform_indices = @transform_3, window_bounds = array<i64: 128, 128>}, {pipeline_mode = #tpu.pipeline_mode<synchronous>, transform_indices = @transform_4, window_bounds = array<i64: 1, 128>}, {pipeline_mode = #tpu.pipeline_mode<synchronous>, transform_indices = @transform_5, window_bounds = array<i64: 128, 8>}, {pipeline_mode = #tpu.pipeline_mode<synchronous>, transform_indices = @transform_6, window_bounds = array<i64: 1, 8>}, {pipeline_mode = #tpu.pipeline_mode<synchronous>, transform_indices = @transform_7, window_bounds = array<i64: 1, 1>}, {pipeline_mode = #tpu.pipeline_mode<synchronous>, transform_indices = @transform_8, window_bounds = array<i64: 2, 128>}, {pipeline_mode = #tpu.pipeline_mode<synchronous>, transform_indices = @transform_9, window_bounds = array<i64: 2, 1>}, {pipeline_mode = #tpu.pipeline_mode<synchronous>, transform_indices = @transform_10, window_bounds = array<i64: 2, 1>}]} {
    %c0 = arith.constant 0 : index
    %c0_0 = arith.constant 0 : index
    %0 = vector.load %arg2[%c0, %c0_0] : memref<4x1024xbf16, #tpu.memory_space<vmem>>, vector<4x1024xbf16>
    %c0_1 = arith.constant 0 : index
    %c0_2 = arith.constant 0 : index
    %1 = vector.load %arg3[%c0_1, %c0_2] : memref<1024x128xbf16, #tpu.memory_space<vmem>>, vector<1024x128xbf16>
    %cst = arith.constant dense<0.000000e+00> : vector<4x128xf32>
    %2 = tpu.matmul %0, %1, %cst {dimension_numbers = #tpu.dot_dimension_numbers<[1], [0], [0], [1], [0, 0, 1, 1], [], []>} : vector<4x1024xbf16>, vector<1024x128xbf16>, vector<4x128xf32> -> vector<4x128xf32>
    %c0_3 = arith.constant 0 : index
    %c0_4 = arith.constant 0 : index
    %3 = vector.load %arg4[%c0_3, %c0_4] : memref<1x128xf32, #tpu.memory_space<vmem>>, vector<1x128xf32>
    %4 = vector.broadcast %3 : vector<1x128xf32> to vector<4x128xf32>
    %5 = arith.addf %2, %4 : vector<4x128xf32>
    %cst_5 = arith.constant 0.000000e+00 : f32
    %6 = vector.broadcast %cst_5 : f32 to vector<4x128xf32>
    %7 = arith.maximumf %5, %6 : vector<4x128xf32>
    %8 = arith.truncf %7 : vector<4x128xf32> to vector<4x128xbf16>
    %c0_6 = arith.constant 0 : index
    %c0_7 = arith.constant 0 : index
    %9 = vector.load %arg5[%c0_6, %c0_7] : memref<128x128xbf16, #tpu.memory_space<vmem>>, vector<128x128xbf16>
    %cst_8 = arith.constant dense<0.000000e+00> : vector<4x128xf32>
    %10 = tpu.matmul %8, %9, %cst_8 {dimension_numbers = #tpu.dot_dimension_numbers<[1], [0], [0], [1], [0, 0, 1, 1], [], []>} : vector<4x128xbf16>, vector<128x128xbf16>, vector<4x128xf32> -> vector<4x128xf32>
    %c0_9 = arith.constant 0 : index
    %c0_10 = arith.constant 0 : index
    %11 = vector.load %arg6[%c0_9, %c0_10] : memref<1x128xf32, #tpu.memory_space<vmem>>, vector<1x128xf32>
    %12 = vector.broadcast %11 : vector<1x128xf32> to vector<4x128xf32>
    %13 = arith.addf %10, %12 : vector<4x128xf32>
    %cst_11 = arith.constant 0.000000e+00 : f32
    %14 = vector.broadcast %cst_11 : f32 to vector<4x128xf32>
    %15 = arith.maximumf %13, %14 : vector<4x128xf32>
    %16 = arith.truncf %15 : vector<4x128xf32> to vector<4x128xbf16>
    %c0_12 = arith.constant 0 : index
    %c0_13 = arith.constant 0 : index
    %17 = vector.load %arg7[%c0_12, %c0_13] : memref<128x8xbf16, #tpu.memory_space<vmem>>, vector<128x8xbf16>
    %cst_14 = arith.constant dense<0.000000e+00> : vector<4x8xf32>
    %18 = tpu.matmul %16, %17, %cst_14 {dimension_numbers = #tpu.dot_dimension_numbers<[1], [0], [0], [1], [0, 0, 1, 1], [], []>} : vector<4x128xbf16>, vector<128x8xbf16>, vector<4x8xf32> -> vector<4x8xf32>
    %c0_15 = arith.constant 0 : index
    %c0_16 = arith.constant 0 : index
    %19 = vector.load %arg8[%c0_15, %c0_16] : memref<1x8xf32, #tpu.memory_space<vmem>>, vector<1x8xf32>
    %20 = vector.broadcast %19 : vector<1x8xf32> to vector<4x8xf32>
    %21 = arith.addf %18, %20 : vector<4x8xf32>
    %22 = vector.extract_strided_slice %21 {offsets = [0, 0], sizes = [2, 8], strides = [1, 1]} : vector<4x8xf32> to vector<2x8xf32>
    %23 = vector.extract_strided_slice %21 {offsets = [2, 0], sizes = [2, 8], strides = [1, 1]} : vector<4x8xf32> to vector<2x8xf32>
    %cst_17 = arith.constant dense<0xFF800000> : vector<2xf32>
    %24 = vector.multi_reduction <maximumf>, %23, %cst_17 [1] : vector<2x8xf32> to vector<2xf32>
    %25 = vector.shape_cast %24 : vector<2xf32> to vector<2x1xf32>
    %26 = vector.broadcast %25 : vector<2x1xf32> to vector<2x8xf32>
    %27 = arith.subf %23, %26 : vector<2x8xf32>
    %28 = math.exp %27 : vector<2x8xf32>
    %cst_18 = arith.constant dense<0.000000e+00> : vector<2xf32>
    %29 = vector.multi_reduction <add>, %28, %cst_18 [1] : vector<2x8xf32> to vector<2xf32>
    %30 = vector.shape_cast %29 : vector<2xf32> to vector<2x1xf32>
    %31 = math.log %30 : vector<2x1xf32>
    %32 = arith.addf %31, %25 : vector<2x1xf32>
    %33 = arith.subf %25, %32 : vector<2x1xf32>
    %34 = math.exp %33 : vector<2x1xf32>
    %c0_19 = arith.constant 0 : index
    %c0_20 = arith.constant 0 : index
    %35 = vector.load %arg11[%c0_19, %c0_20] : memref<2x1xf32, #tpu.memory_space<vmem>>, vector<2x1xf32>
    tpu.vector_store %arg11[%c0_19, %c0_20], %34 {strides = array<i32>} : memref<2x1xf32, #tpu.memory_space<vmem>>, vector<2x1xf32>,
    %36 = tpu.iota {dimensions = array<i32: 1>} : vector<2x8xi32>
    %37 = vector.broadcast %25 : vector<2x1xf32> to vector<2x8xf32>
    %38 = arith.cmpf oge, %23, %37 : vector<2x8xf32>
    %c8_i32 = arith.constant 8 : i32
    %39 = vector.broadcast %c8_i32 : i32 to vector<2x8xi32>
    %40 = arith.select %38, %36, %39 : vector<2x8xi1>, vector<2x8xi32>
    %cst_21 = arith.constant dense<2147483647> : vector<2xi32>
    %41 = vector.multi_reduction <minsi>, %40, %cst_21 [1] : vector<2x8xi32> to vector<2xi32>
    %42 = vector.shape_cast %41 : vector<2xi32> to vector<2x1xi32>
    %c0_22 = arith.constant 0 : index
    %c0_23 = arith.constant 0 : index
    %43 = vector.load %arg12[%c0_22, %c0_23] : memref<2x1xi32, #tpu.memory_space<vmem>>, vector<2x1xi32>
    tpu.vector_store %arg12[%c0_22, %c0_23], %42 {strides = array<i32>} : memref<2x1xi32, #tpu.memory_space<vmem>>, vector<2x1xi32>,
    %cst_24 = arith.constant dense<0xFF800000> : vector<2xf32>
    %44 = vector.multi_reduction <maximumf>, %22, %cst_24 [1] : vector<2x8xf32> to vector<2xf32>
    %45 = vector.shape_cast %44 : vector<2xf32> to vector<2x1xf32>
    %46 = vector.broadcast %45 : vector<2x1xf32> to vector<2x8xf32>
    %47 = arith.subf %22, %46 : vector<2x8xf32>
    %48 = math.exp %47 : vector<2x8xf32>
    %cst_25 = arith.constant dense<0.000000e+00> : vector<2xf32>
    %49 = vector.multi_reduction <add>, %48, %cst_25 [1] : vector<2x8xf32> to vector<2xf32>
    %50 = vector.shape_cast %49 : vector<2xf32> to vector<2x1xf32>
    %51 = math.log %50 : vector<2x1xf32>
    %52 = arith.addf %51, %45 : vector<2x1xf32>
    %53 = vector.broadcast %52 : vector<2x1xf32> to vector<2x8xf32>
    %54 = arith.subf %22, %53 : vector<2x8xf32>
    %55 = tpu.iota {dimensions = array<i32: 1>} : vector<1x8xi32>
    %c0_26 = arith.constant 0 : index
    %56 = memref.load %arg1[%c0_26] : memref<2xi32, #tpu.memory_space<smem>>
    %57 = vector.extract_strided_slice %54 {offsets = [0, 0], sizes = [1, 8], strides = [1, 1]} : vector<2x8xf32> to vector<1x8xf32>
    %58 = vector.broadcast %56 : i32 to vector<1x8xi32>
    %59 = arith.cmpi eq, %55, %58 : vector<1x8xi32>
    %cst_27 = arith.constant 0.000000e+00 : f32
    %60 = vector.broadcast %cst_27 : f32 to vector<1x8xf32>
    %61 = arith.select %59, %57, %60 : vector<1x8xi1>, vector<1x8xf32>
    %62 = vector.shape_cast %61 : vector<1x8xf32> to vector<1x1x8xf32>
    %cst_28 = arith.constant dense<0.000000e+00> : vector<1xf32>
    %63 = vector.multi_reduction <add>, %62, %cst_28 [1, 2] : vector<1x1x8xf32> to vector<1xf32>
    %64 = vector.shape_cast %63 : vector<1xf32> to vector<1x1x1xf32>
    %65 = vector.extract %64[0, 0, 0] : f32 from vector<1x1x1xf32>
    %cst_29 = arith.constant 0.000000e+00 : f32
    %66 = arith.subf %cst_29, %65 : f32
    %c1 = arith.constant 1 : index
    %67 = memref.load %arg1[%c1] : memref<2xi32, #tpu.memory_space<smem>>
    %68 = vector.extract_strided_slice %54 {offsets = [1, 0], sizes = [1, 8], strides = [1, 1]} : vector<2x8xf32> to vector<1x8xf32>
    %69 = vector.broadcast %67 : i32 to vector<1x8xi32>
    %70 = arith.cmpi eq, %55, %69 : vector<1x8xi32>
    %cst_30 = arith.constant 0.000000e+00 : f32
    %71 = vector.broadcast %cst_30 : f32 to vector<1x8xf32>
    %72 = arith.select %70, %68, %71 : vector<1x8xi1>, vector<1x8xf32>
    %73 = vector.shape_cast %72 : vector<1x8xf32> to vector<1x1x8xf32>
    %cst_31 = arith.constant dense<0.000000e+00> : vector<1xf32>
    %74 = vector.multi_reduction <add>, %73, %cst_31 [1, 2] : vector<1x1x8xf32> to vector<1xf32>
    %75 = vector.shape_cast %74 : vector<1xf32> to vector<1x1x1xf32>
    %76 = vector.extract %75[0, 0, 0] : f32 from vector<1x1x1xf32>
    %77 = arith.subf %66, %76 : f32
    %cst_32 = arith.constant 2.000000e+00 : f32
    %78 = arith.divf %77, %cst_32 : f32
    %79 = arith.mulf %15, %15 : vector<4x128xf32>
    %cst_33 = arith.constant dense<0.000000e+00> : vector<4xf32>
    %80 = vector.multi_reduction <add>, %79, %cst_33 [1] : vector<4x128xf32> to vector<4xf32>
    %81 = vector.shape_cast %80 : vector<4xf32> to vector<4x1xf32>
    %cst_34 = arith.constant 1.000000e+00 : f32
    %82 = vector.broadcast %cst_34 : f32 to vector<1x128xf32>
    %cst_35 = arith.constant dense<0.000000e+00> : vector<1x4xf32>
    %83 = tpu.matmul %82, %79, %cst_35 {dimension_numbers = #tpu.dot_dimension_numbers<[1], [1], [0], [0], [0, 0, 1, 0], [], []>} : vector<1x128xf32>, vector<4x128xf32>, vector<1x4xf32> -> vector<1x4xf32>
    %cst_36 = arith.constant dense<0.000000e+00> : vector<4x4xf32>
    %84 = tpu.matmul %15, %15, %cst_36 {dimension_numbers = #tpu.dot_dimension_numbers<[1], [1], [0], [0], [0, 0, 1, 0], [], []>} : vector<4x128xf32>, vector<4x128xf32>, vector<4x4xf32> -> vector<4x4xf32>
    %85 = vector.broadcast %81 : vector<4x1xf32> to vector<4x4xf32>
    %86 = vector.broadcast %83 : vector<1x4xf32> to vector<4x4xf32>
    %87 = arith.addf %85, %86 : vector<4x4xf32>
    %cst_37 = arith.constant 2.000000e+00 : f32
    %88 = vector.broadcast %cst_37 : f32 to vector<4x4xf32>
    %89 = arith.mulf %88, %84 : vector<4x4xf32>
    %90 = arith.subf %87, %89 : vector<4x4xf32>
    %cst_38 = arith.constant 0.000000e+00 : f32
    %91 = vector.broadcast %cst_38 : f32 to vector<4x4xf32>
    %92 = arith.maximumf %90, %91 : vector<4x4xf32>
    %93 = vector.shape_cast %92 : vector<4x4xf32> to vector<1x4x4xf32>
    %cst_39 = arith.constant dense<0.000000e+00> : vector<1xf32>
    %94 = vector.multi_reduction <add>, %93, %cst_39 [1, 2] : vector<1x4x4xf32> to vector<1xf32>
    %95 = vector.shape_cast %94 : vector<1xf32> to vector<1x1x1xf32>
    %96 = vector.extract %95[0, 0, 0] : f32 from vector<1x1x1xf32>
    %cst_40 = arith.constant 1.200000e+01 : f32
    %97 = arith.divf %96, %cst_40 : f32
    %cst_41 = arith.constant 4.000000e+00 : f32
    %98 = arith.divf %97, %cst_41 : f32
    %cst_42 = arith.constant 0.000000e+00 : f32
    %99 = vector.broadcast %cst_42 : f32 to vector<4x4xf32>
    %cst_43 = arith.constant 0.000000e+00 : f32
    %100 = vector.broadcast %cst_43 : f32 to vector<4x4xf32>
    %101 = arith.subf %100, %92 : vector<4x4xf32>
    %cst_44 = arith.constant 1.000000e+00 : f32
    %102 = arith.mulf %98, %cst_44 : f32
    %103 = vector.broadcast %102 : f32 to vector<4x4xf32>
    %104 = arith.divf %101, %103 : vector<4x4xf32>
    %105 = math.exp %104 : vector<4x4xf32>
    %106 = arith.addf %99, %105 : vector<4x4xf32>
    %cst_45 = arith.constant 0.000000e+00 : f32
    %107 = vector.broadcast %cst_45 : f32 to vector<4x4xf32>
    %108 = arith.subf %107, %92 : vector<4x4xf32>
    %cst_46 = arith.constant 2.000000e+00 : f32
    %109 = arith.mulf %98, %cst_46 : f32
    %110 = vector.broadcast %109 : f32 to vector<4x4xf32>
    %111 = arith.divf %108, %110 : vector<4x4xf32>
    %112 = math.exp %111 : vector<4x4xf32>
    %113 = arith.addf %106, %112 : vector<4x4xf32>
    %cst_47 = arith.constant 0.000000e+00 : f32
    %114 = vector.broadcast %cst_47 : f32 to vector<4x4xf32>
    %115 = arith.subf %114, %92 : vector<4x4xf32>
    %cst_48 = arith.constant 4.000000e+00 : f32
    %116 = arith.mulf %98, %cst_48 : f32
    %117 = vector.broadcast %116 : f32 to vector<4x4xf32>
    %118 = arith.divf %115, %117 : vector<4x4xf32>
    %119 = math.exp %118 : vector<4x4xf32>
    %120 = arith.addf %113, %119 : vector<4x4xf32>
    %cst_49 = arith.constant 0.000000e+00 : f32
    %121 = vector.broadcast %cst_49 : f32 to vector<4x4xf32>
    %122 = arith.subf %121, %92 : vector<4x4xf32>
    %cst_50 = arith.constant 8.000000e+00 : f32
    %123 = arith.mulf %98, %cst_50 : f32
    %124 = vector.broadcast %123 : f32 to vector<4x4xf32>
    %125 = arith.divf %122, %124 : vector<4x4xf32>
    %126 = math.exp %125 : vector<4x4xf32>
    %127 = arith.addf %120, %126 : vector<4x4xf32>
    %cst_51 = arith.constant 0.000000e+00 : f32
    %128 = vector.broadcast %cst_51 : f32 to vector<4x4xf32>
    %129 = arith.subf %128, %92 : vector<4x4xf32>
    %cst_52 = arith.constant 1.600000e+01 : f32
    %130 = arith.mulf %98, %cst_52 : f32
    %131 = vector.broadcast %130 : f32 to vector<4x4xf32>
    %132 = arith.divf %129, %131 : vector<4x4xf32>
    %133 = math.exp %132 : vector<4x4xf32>
    %134 = arith.addf %127, %133 : vector<4x4xf32>
    %135 = vector.extract_strided_slice %134 {offsets = [0, 0], sizes = [2, 2], strides = [1, 1]} : vector<4x4xf32> to vector<2x2xf32>
    %136 = vector.shape_cast %135 : vector<2x2xf32> to vector<1x2x2xf32>
    %cst_53 = arith.constant dense<0.000000e+00> : vector<1xf32>
    %137 = vector.multi_reduction <add>, %136, %cst_53 [1, 2] : vector<1x2x2xf32> to vector<1xf32>
    %138 = vector.shape_cast %137 : vector<1xf32> to vector<1x1x1xf32>
    %139 = vector.extract %138[0, 0, 0] : f32 from vector<1x1x1xf32>
    %cst_54 = arith.constant 4.000000e+00 : f32
    %140 = arith.divf %139, %cst_54 : f32
    %141 = vector.extract_strided_slice %134 {offsets = [2, 2], sizes = [2, 2], strides = [1, 1]} : vector<4x4xf32> to vector<2x2xf32>
    %142 = vector.shape_cast %141 : vector<2x2xf32> to vector<1x2x2xf32>
    %cst_55 = arith.constant dense<0.000000e+00> : vector<1xf32>
    %143 = vector.multi_reduction <add>, %142, %cst_55 [1, 2] : vector<1x2x2xf32> to vector<1xf32>
    %144 = vector.shape_cast %143 : vector<1xf32> to vector<1x1x1xf32>
    %145 = vector.extract %144[0, 0, 0] : f32 from vector<1x1x1xf32>
    %cst_56 = arith.constant 4.000000e+00 : f32
    %146 = arith.divf %145, %cst_56 : f32
    %147 = arith.addf %140, %146 : f32
    %148 = vector.extract_strided_slice %134 {offsets = [0, 2], sizes = [2, 2], strides = [1, 1]} : vector<4x4xf32> to vector<2x2xf32>
    %149 = vector.shape_cast %148 : vector<2x2xf32> to vector<1x2x2xf32>
    %cst_57 = arith.constant dense<0.000000e+00> : vector<1xf32>
    %150 = vector.multi_reduction <add>, %149, %cst_57 [1, 2] : vector<1x2x2xf32> to vector<1xf32>
    %151 = vector.shape_cast %150 : vector<1xf32> to vector<1x1x1xf32>
    %152 = vector.extract %151[0, 0, 0] : f32 from vector<1x1x1xf32>
    %cst_58 = arith.constant 4.000000e+00 : f32
    %153 = arith.divf %152, %cst_58 : f32
    %154 = arith.subf %147, %153 : f32
    %155 = vector.extract_strided_slice %134 {offsets = [2, 0], sizes = [2, 2], strides = [1, 1]} : vector<4x4xf32> to vector<2x2xf32>
    %156 = vector.shape_cast %155 : vector<2x2xf32> to vector<1x2x2xf32>
    %cst_59 = arith.constant dense<0.000000e+00> : vector<1xf32>
    %157 = vector.multi_reduction <add>, %156, %cst_59 [1, 2] : vector<1x2x2xf32> to vector<1xf32>
    %158 = vector.shape_cast %157 : vector<1xf32> to vector<1x1x1xf32>
    %159 = vector.extract %158[0, 0, 0] : f32 from vector<1x1x1xf32>
    %cst_60 = arith.constant 4.000000e+00 : f32
    %160 = arith.divf %159, %cst_60 : f32
    %161 = arith.subf %154, %160 : f32
    %162 = arith.addf %78, %161 : f32
    %163 = vector.broadcast %162 : f32 to vector<1x1xf32>
    %c0_61 = arith.constant 0 : index
    %c0_62 = arith.constant 0 : index
    %164 = vector.load %arg9[%c0_61, %c0_62] : memref<1x1xf32, #tpu.memory_space<vmem>>, vector<1x1xf32>
    tpu.vector_store %arg9[%c0_61, %c0_62], %163 {strides = array<i32>} : memref<1x1xf32, #tpu.memory_space<vmem>>, vector<1x1xf32>,
    %165 = vector.extract_strided_slice %7 {offsets = [2, 0], sizes = [2, 128], strides = [1, 1]} : vector<4x128xf32> to vector<2x128xf32>
    %c0_63 = arith.constant 0 : index
    %c0_64 = arith.constant 0 : index
    %166 = vector.load %arg10[%c0_63, %c0_64] : memref<2x128xf32, #tpu.memory_space<vmem>>, vector<2x128xf32>
    tpu.vector_store %arg10[%c0_63, %c0_64], %165 {strides = array<i32>} : memref<2x128xf32, #tpu.memory_space<vmem>>, vector<2x128xf32>,
    return
  }
  func.func @transform_0(%arg0: i32, %arg1: memref<2xi32, #tpu.memory_space<smem>>) -> (i32, i32) {
    %c0_i32 = arith.constant 0 : i32
    %c0_i32_0 = arith.constant 0 : i32
    %c0_i32_1 = arith.constant 0 : i32
    return %c0_i32, %c0_i32_0 : i32, i32
  }
  func.func @transform_1(%arg0: i32, %arg1: memref<2xi32, #tpu.memory_space<smem>>) -> (i32, i32) {
    %c0_i32 = arith.constant 0 : i32
    %c0_i32_0 = arith.constant 0 : i32
    %c0_i32_1 = arith.constant 0 : i32
    return %c0_i32, %c0_i32_0 : i32, i32
  }
  func.func @transform_2(%arg0: i32, %arg1: memref<2xi32, #tpu.memory_space<smem>>) -> (i32, i32) {
    %c0_i32 = arith.constant 0 : i32
    %c0_i32_0 = arith.constant 0 : i32
    %c0_i32_1 = arith.constant 0 : i32
    return %c0_i32, %c0_i32_0 : i32, i32
  }
  func.func @transform_3(%arg0: i32, %arg1: memref<2xi32, #tpu.memory_space<smem>>) -> (i32, i32) {
    %c0_i32 = arith.constant 0 : i32
    %c0_i32_0 = arith.constant 0 : i32
    %c0_i32_1 = arith.constant 0 : i32
    return %c0_i32, %c0_i32_0 : i32, i32
  }
  func.func @transform_4(%arg0: i32, %arg1: memref<2xi32, #tpu.memory_space<smem>>) -> (i32, i32) {
    %c0_i32 = arith.constant 0 : i32
    %c0_i32_0 = arith.constant 0 : i32
    %c0_i32_1 = arith.constant 0 : i32
    return %c0_i32, %c0_i32_0 : i32, i32
  }
  func.func @transform_5(%arg0: i32, %arg1: memref<2xi32, #tpu.memory_space<smem>>) -> (i32, i32) {
    %c0_i32 = arith.constant 0 : i32
    %c0_i32_0 = arith.constant 0 : i32
    %c0_i32_1 = arith.constant 0 : i32
    return %c0_i32, %c0_i32_0 : i32, i32
  }
  func.func @transform_6(%arg0: i32, %arg1: memref<2xi32, #tpu.memory_space<smem>>) -> (i32, i32) {
    %c0_i32 = arith.constant 0 : i32
    %c0_i32_0 = arith.constant 0 : i32
    %c0_i32_1 = arith.constant 0 : i32
    return %c0_i32, %c0_i32_0 : i32, i32
  }
  func.func @transform_7(%arg0: i32, %arg1: memref<2xi32, #tpu.memory_space<smem>>) -> (i32, i32) {
    %c0_i32 = arith.constant 0 : i32
    %c0_i32_0 = arith.constant 0 : i32
    %c0_i32_1 = arith.constant 0 : i32
    return %c0_i32, %c0_i32_0 : i32, i32
  }
  func.func @transform_8(%arg0: i32, %arg1: memref<2xi32, #tpu.memory_space<smem>>) -> (i32, i32) {
    %c0_i32 = arith.constant 0 : i32
    %c0_i32_0 = arith.constant 0 : i32
    %c0_i32_1 = arith.constant 0 : i32
    return %c0_i32, %c0_i32_0 : i32, i32
  }
  func.func @transform_9(%arg0: i32, %arg1: memref<2xi32, #tpu.memory_space<smem>>) -> (i32, i32) {
    %c0_i32 = arith.constant 0 : i32
    %c0_i32_0 = arith.constant 0 : i32
    %c0_i32_1 = arith.constant 0 : i32
    return %c0_i32, %c0_i32_0 : i32, i32
  }
  func.func @transform_10(%arg0: i32, %arg1: memref<2xi32, #tpu.memory_space<smem>>) -> (i32, i32) {
    %c0_i32 = arith.constant 0 : i32
    %c0_i32_0 = arith.constant 0 : i32
    %c0_i32_1 = arith.constant 0 : i32
    return %c0_i32, %c0_i32_0 : i32, i32
  }
}

</mosaic_0001>

<llo_original>
// kernel: transfernet_forward.1
$region0: #{transfernet_forward.1}
  #allocation0 [shape = 'u32[]', space=smem, size = 0x4, offset = 0x4, fixed_abs, tag = 'smem constant byte address 0x4 - core index']
  #allocation1 [shape = 'u32[72,128]{1,0:T(1,128)}', space=vmem, size = 0x9000, scoped, tag = 'internal scratch']
  #allocation2 [shape = 's32[1]{0}', space=sflag, size = 0x4, scoped, tag = 'scoped memory for transfernet_forward.1']
  #allocation3 [shape = 'u8[512]{0}', space=smem, size = 0x200, scoped, tag = 'prefetched SMEM operand 0']
  %s0 = inlined_call_operand.vmem [shape: s32[2], index: 0, kind: input, shape index: {}]
  %s1 = inlined_call_operand.vmem [shape: bf16[4,1024], index: 1, kind: input, shape index: {}]
  %s2 = inlined_call_operand.vmem [shape: bf16[1024,128], index: 2, kind: input, shape index: {}]
  %s3 = inlined_call_operand.vmem [shape: f32[1,128], index: 3, kind: input, shape index: {}]
  %s4 = inlined_call_operand.vmem [shape: bf16[128,128], index: 4, kind: input, shape index: {}]
  %s5 = inlined_call_operand.vmem [shape: f32[1,128], index: 5, kind: input, shape index: {}]
  %s6 = inlined_call_operand.vmem [shape: bf16[128,8], index: 6, kind: input, shape index: {}]
  %s7 = inlined_call_operand.vmem [shape: f32[1,8], index: 7, kind: input, shape index: {}]
  %s8 = inlined_call_operand.hbm [shape: f32[1,1], index: 8, kind: output, shape index: {0}]
  %s9 = inlined_call_operand.hbm [shape: f32[2,128], index: 9, kind: output, shape index: {1}]
  %s10 = inlined_call_operand.vmem [shape: f32[2,1], index: 10, kind: output, shape index: {2}]
  %s11 = inlined_call_operand.vmem [shape: s32[2,1], index: 11, kind: output, shape index: {3}]
  %12 = xla_tuple %s8, %s9, %s10, %s11
  %s13 = sld [smem:[#allocation0]]
  $region62: #{transfernet_forward.1} parent=0
    _
  %s15 = ssub.s32 1, %s13
  %s16 = scalar_select 0, %s15, %s13
  %s18 = sshll.u32 %s0, 4
  %s19 = int_to_ptr.vmem [resolvable:$true] %s18
  %21 = dma.vmem_to_smem %s19, 16, [#allocation3], [#allocation2]
  %23 = dma.done [#allocation2], 16
  %24 = sfence
  $region1: #{transfernet_forward.1} parent=0
    #allocation4 [shape = 'u8[512]{0}', space=vmem, size = 0x400, scoped, tag = 'output window, operand 0, single buffered']
    #allocation5 [shape = 's32[1]{0}', space=sflag, size = 0x4, scoped, tag = 'scoped memory for transfernet_forward.1']
    #allocation6 [shape = 'u8[1024]{0}', space=vmem, size = 0x400, scoped, tag = 'output window, operand 1, single buffered']
    #allocation7 [shape = 's32[1]{0}', space=sflag, size = 0x4, scoped, tag = 'scoped memory for transfernet_forward.1']
    %25 = vsyncpa [#allocation5], 0
    %26 = vsyncpa [#allocation7], 0
    // Predicated region
    $region2: #{transfernet_forward.1} parent=1 // pred_check
      _
    $region3: #{transfernet_forward.1} parent=1 // pred_check_branch
      %28 = sbr.rel (0) target = $region5
    $region4: #{transfernet_forward.1} parent=1 // pred_region
      _
    $region5: #{transfernet_forward.1} parent=1 // pred_fallthru
      _
    // Predicated region
    $region6: #{transfernet_forward.1} parent=1 // pred_check
      _
    $region7: #{transfernet_forward.1} parent=1 // pred_check_branch
      %30 = sbr.rel (0) target = $region9
    $region8: #{transfernet_forward.1} parent=1 // pred_region
      _
    $region9: #{transfernet_forward.1} parent=1 // pred_fallthru
      _
    // Predicated region
    $region10: #{transfernet_forward.1} parent=1 // pred_check
      _
    $region11: #{transfernet_forward.1} parent=1 // pred_check_branch
      %32 = sbr.rel (0) target = $region13
    $region12: #{transfernet_forward.1} parent=1 // pred_region
      _
    $region13: #{transfernet_forward.1} parent=1 // pred_fallthru
      _
    // Predicated region
    $region14: #{transfernet_forward.1} parent=1 // pred_check
      _
    $region15: #{transfernet_forward.1} parent=1 // pred_check_branch
      %34 = sbr.rel (0) target = $region17
    $region16: #{transfernet_forward.1} parent=1 // pred_region
      _
    $region17: #{transfernet_forward.1} parent=1 // pred_fallthru
      _
    // Predicated region
    $region18: #{transfernet_forward.1} parent=1 // pred_check
      _
    $region19: #{transfernet_forward.1} parent=1 // pred_check_branch
      %36 = sbr.rel (0) target = $region21
    $region20: #{transfernet_forward.1} parent=1 // pred_region
      _
    $region21: #{transfernet_forward.1} parent=1 // pred_fallthru
      _
    // Predicated region
    $region22: #{transfernet_forward.1} parent=1 // pred_check
      _
    $region23: #{transfernet_forward.1} parent=1 // pred_check_branch
      %38 = sbr.rel (0) target = $region25
    $region24: #{transfernet_forward.1} parent=1 // pred_region
      _
    $region25: #{transfernet_forward.1} parent=1 // pred_fallthru
      _
    // Predicated region
    $region26: #{transfernet_forward.1} parent=1 // pred_check
      _
    $region27: #{transfernet_forward.1} parent=1 // pred_check_branch
      %40 = sbr.rel (0) target = $region29
    $region28: #{transfernet_forward.1} parent=1 // pred_region
      _
    $region29: #{transfernet_forward.1} parent=1 // pred_fallthru
      _
    %v41 = vld [vmem:[%s1] sm:$0xff]
    %v42 = vld [vmem:[%s1 + $0x8] sm:$0xff]
    %v43 = vld [vmem:[%s2] sm:$0xf]
    %v44 = vld [vmem:[%s2 + $0x4] sm:$0xf]
    %v45 = vld [vmem:[%s2 + $0x8] sm:$0xf]
    %v46 = vld [vmem:[%s2 + $0xc] sm:$0xf]
    %v47 = vld [vmem:[%s2 + $0x10] sm:$0xf]
    %v48 = vld [vmem:[%s2 + $0x14] sm:$0xf]
    %v49 = vld [vmem:[%s2 + $0x18] sm:$0xf]
    %v50 = vld [vmem:[%s2 + $0x1c] sm:$0xf]
    %v51 = vld [vmem:[%s2 + $0x20] sm:$0xf]
    %v52 = vld [vmem:[%s2 + $0x24] sm:$0xf]
    %v53 = vld [vmem:[%s2 + $0x28] sm:$0xf]
    %v54 = vld [vmem:[%s2 + $0x2c] sm:$0xf]
    %v55 = vld [vmem:[%s2 + $0x30] sm:$0xf]
    %v56 = vld [vmem:[%s2 + $0x34] sm:$0xf]
    %v57 = vld [vmem:[%s2 + $0x38] sm:$0xf]
    %v58 = vld [vmem:[%s2 + $0x3c] sm:$0xf]
    %v59 = vld [vmem:[%s2 + $0x40] sm:$0xf]
    %v60 = vld [vmem:[%s2 + $0x44] sm:$0xf]
    %v61 = vld [vmem:[%s2 + $0x48] sm:$0xf]
    %v62 = vld [vmem:[%s2 + $0x4c] sm:$0xf]
    %v63 = vld [vmem:[%s2 + $0x50] sm:$0xf]
    %v64 = vld [vmem:[%s2 + $0x54] sm:$0xf]
    %v65 = vld [vmem:[%s2 + $0x58] sm:$0xf]
    %v66 = vld [vmem:[%s2 + $0x5c] sm:$0xf]
    %v67 = vld [vmem:[%s2 + $0x60] sm:$0xf]
    %v68 = vld [vmem:[%s2 + $0x64] sm:$0xf]
    %v69 = vld [vmem:[%s2 + $0x68] sm:$0xf]
    %v70 = vld [vmem:[%s2 + $0x6c] sm:$0xf]
    %v71 = vld [vmem:[%s2 + $0x70] sm:$0xf]
    %v72 = vld [vmem:[%s2 + $0x74] sm:$0xf]
    %v73 = vld [vmem:[%s2 + $0x78] sm:$0xf]
    %v74 = vld [vmem:[%s2 + $0x7c] sm:$0xf]
    %v75 = vld [vmem:[%s2 + $0x80] sm:$0xf]
    %v76 = vld [vmem:[%s2 + $0x84] sm:$0xf]
    %v77 = vld [vmem:[%s2 + $0x88] sm:$0xf]
    %v78 = vld [vmem:[%s2 + $0x8c] sm:$0xf]
    %v79 = vld [vmem:[%s2 + $0x90] sm:$0xf]
    %v80 = vld [vmem:[%s2 + $0x94] sm:$0xf]
    %v81 = vld [vmem:[%s2 + $0x98] sm:$0xf]
    %v82 = vld [vmem:[%s2 + $0x9c] sm:$0xf]
    %v83 = vld [vmem:[%s2 + $0xa0] sm:$0xf]
    %v84 = vld [vmem:[%s2 + $0xa4] sm:$0xf]
    %v85 = vld [vmem:[%s2 + $0xa8] sm:$0xf]
    %v86 = vld [vmem:[%s2 + $0xac] sm:$0xf]
    %v87 = vld [vmem:[%s2 + $0xb0] sm:$0xf]
    %v88 = vld [vmem:[%s2 + $0xb4] sm:$0xf]
    %v89 = vld [vmem:[%s2 + $0xb8] sm:$0xf]
    %v90 = vld [vmem:[%s2 + $0xbc] sm:$0xf]
    %v91 = vld [vmem:[%s2 + $0xc0] sm:$0xf]
    %v92 = vld [vmem:[%s2 + $0xc4] sm:$0xf]
    %v93 = vld [vmem:[%s2 + $0xc8] sm:$0xf]
    %v94 = vld [vmem:[%s2 + $0xcc] sm:$0xf]
    %v95 = vld [vmem:[%s2 + $0xd0] sm:$0xf]
    %v96 = vld [vmem:[%s2 + $0xd4] sm:$0xf]
    %v97 = vld [vmem:[%s2 + $0xd8] sm:$0xf]
    %v98 = vld [vmem:[%s2 + $0xdc] sm:$0xf]
    %v99 = vld [vmem:[%s2 + $0xe0] sm:$0xf]
    %v100 = vld [vmem:[%s2 + $0xe4] sm:$0xf]
    %v101 = vld [vmem:[%s2 + $0xe8] sm:$0xf]
    %v102 = vld [vmem:[%s2 + $0xec] sm:$0xf]
    %v103 = vld [vmem:[%s2 + $0xf0] sm:$0xf]
    %v104 = vld [vmem:[%s2 + $0xf4] sm:$0xf]
    %v105 = vld [vmem:[%s2 + $0xf8] sm:$0xf]
    %v106 = vld [vmem:[%s2 + $0xfc] sm:$0xf]
    %v107 = vld [vmem:[%s2 + $0x100] sm:$0xf]
    %v108 = vld [vmem:[%s2 + $0x104] sm:$0xf]
    %v109 = vld [vmem:[%s2 + $0x108] sm:$0xf]
    %v110 = vld [vmem:[%s2 + $0x10c] sm:$0xf]
    %v111 = vld [vmem:[%s2 + $0x110] sm:$0xf]
    %v112 = vld [vmem:[%s2 + $0x114] sm:$0xf]
    %v113 = vld [vmem:[%s2 + $0x118] sm:$0xf]
    %v114 = vld [vmem:[%s2 + $0x11c] sm:$0xf]
    %v115 = vld [vmem:[%s2 + $0x120] sm:$0xf]
    %v116 = vld [vmem:[%s2 + $0x124] sm:$0xf]
    %v117 = vld [vmem:[%s2 + $0x128] sm:$0xf]
    %v118 = vld [vmem:[%s2 + $0x12c] sm:$0xf]
    %v119 = vld [vmem:[%s2 + $0x130] sm:$0xf]
    %v120 = vld [vmem:[%s2 + $0x134] sm:$0xf]
    %v121 = vld [vmem:[%s2 + $0x138] sm:$0xf]
    %v122 = vld [vmem:[%s2 + $0x13c] sm:$0xf]
    %v123 = vld [vmem:[%s2 + $0x140] sm:$0xf]
    %v124 = vld [vmem:[%s2 + $0x144] sm:$0xf]
    %v125 = vld [vmem:[%s2 + $0x148] sm:$0xf]
    %v126 = vld [vmem:[%s2 + $0x14c] sm:$0xf]
    %v127 = vld [vmem:[%s2 + $0x150] sm:$0xf]
    %v128 = vld [vmem:[%s2 + $0x154] sm:$0xf]
    %v129 = vld [vmem:[%s2 + $0x158] sm:$0xf]
    %v130 = vld [vmem:[%s2 + $0x15c] sm:$0xf]
    %v131 = vld [vmem:[%s2 + $0x160] sm:$0xf]
    %v132 = vld [vmem:[%s2 + $0x164] sm:$0xf]
    %v133 = vld [vmem:[%s2 + $0x168] sm:$0xf]
    %v134 = vld [vmem:[%s2 + $0x16c] sm:$0xf]
    %v135 = vld [vmem:[%s2 + $0x170] sm:$0xf]
    %v136 = vld [vmem:[%s2 + $0x174] sm:$0xf]
    %v137 = vld [vmem:[%s2 + $0x178] sm:$0xf]
    %v138 = vld [vmem:[%s2 + $0x17c] sm:$0xf]
    %v139 = vld [vmem:[%s2 + $0x180] sm:$0xf]
    %v140 = vld [vmem:[%s2 + $0x184] sm:$0xf]
    %v141 = vld [vmem:[%s2 + $0x188] sm:$0xf]
    %v142 = vld [vmem:[%s2 + $0x18c] sm:$0xf]
    %v143 = vld [vmem:[%s2 + $0x190] sm:$0xf]
    %v144 = vld [vmem:[%s2 + $0x194] sm:$0xf]
    %v145 = vld [vmem:[%s2 + $0x198] sm:$0xf]
    %v146 = vld [vmem:[%s2 + $0x19c] sm:$0xf]
    %v147 = vld [vmem:[%s2 + $0x1a0] sm:$0xf]
    %v148 = vld [vmem:[%s2 + $0x1a4] sm:$0xf]
    %v149 = vld [vmem:[%s2 + $0x1a8] sm:$0xf]
    %v150 = vld [vmem:[%s2 + $0x1ac] sm:$0xf]
    %v151 = vld [vmem:[%s2 + $0x1b0] sm:$0xf]
    %v152 = vld [vmem:[%s2 + $0x1b4] sm:$0xf]
    %v153 = vld [vmem:[%s2 + $0x1b8] sm:$0xf]
    %v154 = vld [vmem:[%s2 + $0x1bc] sm:$0xf]
    %v155 = vld [vmem:[%s2 + $0x1c0] sm:$0xf]
    %v156 = vld [vmem:[%s2 + $0x1c4] sm:$0xf]
    %v157 = vld [vmem:[%s2 + $0x1c8] sm:$0xf]
    %v158 = vld [vmem:[%s2 + $0x1cc] sm:$0xf]
    %v159 = vld [vmem:[%s2 + $0x1d0] sm:$0xf]
    %v160 = vld [vmem:[%s2 + $0x1d4] sm:$0xf]
    %v161 = vld [vmem:[%s2 + $0x1d8] sm:$0xf]
    %v162 = vld [vmem:[%s2 + $0x1dc] sm:$0xf]
    %v163 = vld [vmem:[%s2 + $0x1e0] sm:$0xf]
    %v164 = vld [vmem:[%s2 + $0x1e4] sm:$0xf]
    %v165 = vld [vmem:[%s2 + $0x1e8] sm:$0xf]
    %v166 = vld [vmem:[%s2 + $0x1ec] sm:$0xf]
    %v167 = vld [vmem:[%s2 + $0x1f0] sm:$0xf]
    %v168 = vld [vmem:[%s2 + $0x1f4] sm:$0xf]
    %v169 = vld [vmem:[%s2 + $0x1f8] sm:$0xf]
    %v170 = vld [vmem:[%s2 + $0x1fc] sm:$0xf]
    %v171 = vld [vmem:[%s3] sm:$0x1]
    %v173 = vperm.slane %v171, 0
    %176 = vst [vmem:[#allocation1] ss:$4 sm:$0xff] %v41
    %s178 = scalar_lea.vmem [#allocation1], 32
    %179 = vst [vmem:[%s178] ss:$4 sm:$0xff] %v42
    %v180 = vld.sshfl [vmem:[#allocation1] sm:$0xff pattern:$0x73625140]
    %v181 = vld.sshfl [vmem:[#allocation1 + $0x8] sm:$0xff pattern:$0x73625140]
    %v182 = vld.sshfl [vmem:[#allocation1 + $0x10] sm:$0xff pattern:$0x73625140]
    %v183 = vld.sshfl [vmem:[#allocation1 + $0x18] sm:$0xff pattern:$0x73625140]
    %v184 = vld.sshfl [vmem:[#allocation1 + $0x20] sm:$0xff pattern:$0x73625140]
    %v185 = vld.sshfl [vmem:[#allocation1 + $0x28] sm:$0xff pattern:$0x73625140]
    %v186 = vld.sshfl [vmem:[#allocation1 + $0x30] sm:$0xff pattern:$0x73625140]
    %v187 = vld.sshfl [vmem:[#allocation1 + $0x38] sm:$0xff pattern:$0x73625140]
    %v324 = vunpack.c.l.b16 %v43
    %v325 = vunpack.c.l.b16 %v44
    %v326 = vunpack.c.l.b16 %v45
    %v327 = vunpack.c.l.b16 %v46
    %v328 = vunpack.c.l.b16 %v47
    %v329 = vunpack.c.l.b16 %v48
    %v330 = vunpack.c.l.b16 %v49
    %v331 = vunpack.c.l.b16 %v50
    %v332 = vunpack.c.l.b16 %v51
    %v333 = vunpack.c.l.b16 %v52
    %v334 = vunpack.c.l.b16 %v53
    %v335 = vunpack.c.l.b16 %v54
    %v336 = vunpack.c.l.b16 %v55
    %v337 = vunpack.c.l.b16 %v56
    %v338 = vunpack.c.l.b16 %v57
    %v339 = vunpack.c.l.b16 %v58
    %v340 = vunpack.c.l.b16 %v59
    %v341 = vunpack.c.l.b16 %v60
    %v342 = vunpack.c.l.b16 %v61
    %v343 = vunpack.c.l.b16 %v62
    %v344 = vunpack.c.l.b16 %v63
    %v345 = vunpack.c.l.b16 %v64
    %v346 = vunpack.c.l.b16 %v65
    %v347 = vunpack.c.l.b16 %v66
    %v348 = vunpack.c.l.b16 %v67
    %v349 = vunpack.c.l.b16 %v68
    %v350 = vunpack.c.l.b16 %v69
    %v351 = vunpack.c.l.b16 %v70
    %v352 = vunpack.c.l.b16 %v71
    %v353 = vunpack.c.l.b16 %v72
    %v354 = vunpack.c.l.b16 %v73
    %v355 = vunpack.c.l.b16 %v74
    %v356 = vunpack.c.l.b16 %v75
    %v357 = vunpack.c.l.b16 %v76
    %v358 = vunpack.c.l.b16 %v77
    %v359 = vunpack.c.l.b16 %v78
    %v360 = vunpack.c.l.b16 %v79
    %v361 = vunpack.c.l.b16 %v80
    %v362 = vunpack.c.l.b16 %v81
    %v363 = vunpack.c.l.b16 %v82
    %v364 = vunpack.c.l.b16 %v83
    %v365 = vunpack.c.l.b16 %v84
    %v366 = vunpack.c.l.b16 %v85
    %v367 = vunpack.c.l.b16 %v86
    %v368 = vunpack.c.l.b16 %v87
    %v369 = vunpack.c.l.b16 %v88
    %v370 = vunpack.c.l.b16 %v89
    %v371 = vunpack.c.l.b16 %v90
    %v372 = vunpack.c.l.b16 %v91
    %v373 = vunpack.c.l.b16 %v92
    %v374 = vunpack.c.l.b16 %v93
    %v375 = vunpack.c.l.b16 %v94
    %v376 = vunpack.c.l.b16 %v95
    %v377 = vunpack.c.l.b16 %v96
    %v378 = vunpack.c.l.b16 %v97
    %v379 = vunpack.c.l.b16 %v98
    %v380 = vunpack.c.l.b16 %v99
    %v381 = vunpack.c.l.b16 %v100
    %v382 = vunpack.c.l.b16 %v101
    %v383 = vunpack.c.l.b16 %v102
    %v384 = vunpack.c.l.b16 %v103
    %v385 = vunpack.c.l.b16 %v104
    %v386 = vunpack.c.l.b16 %v105
    %v387 = vunpack.c.l.b16 %v106
    %v388 = vunpack.c.l.b16 %v107
    %v389 = vunpack.c.l.b16 %v108
    %v390 = vunpack.c.l.b16 %v109
    %v391 = vunpack.c.l.b16 %v110
    %v392 = vunpack.c.l.b16 %v111
    %v393 = vunpack.c.l.b16 %v112
    %v394 = vunpack.c.l.b16 %v113
    %v395 = vunpack.c.l.b16 %v114
    %v396 = vunpack.c.l.b16 %v115
    %v397 = vunpack.c.l.b16 %v116
    %v398 = vunpack.c.l.b16 %v117
    %v399 = vunpack.c.l.b16 %v118
    %v400 = vunpack.c.l.b16 %v119
    %v401 = vunpack.c.l.b16 %v120
    %v402 = vunpack.c.l.b16 %v121
    %v403 = vunpack.c.l.b16 %v122
    %v404 = vunpack.c.l.b16 %v123
    %v405 = vunpack.c.l.b16 %v124
    %v406 = vunpack.c.l.b16 %v125
    %v407 = vunpack.c.l.b16 %v126
    %v408 = vunpack.c.l.b16 %v127
    %v409 = vunpack.c.l.b16 %v128
    %v410 = vunpack.c.l.b16 %v129
    %v411 = vunpack.c.l.b16 %v130
    %v412 = vunpack.c.l.b16 %v131
    %v413 = vunpack.c.l.b16 %v132
    %v414 = vunpack.c.l.b16 %v133
    %v415 = vunpack.c.l.b16 %v134
    %v416 = vunpack.c.l.b16 %v135
    %v417 = vunpack.c.l.b16 %v136
    %v418 = vunpack.c.l.b16 %v137
    %v419 = vunpack.c.l.b16 %v138
    %v420 = vunpack.c.l.b16 %v139
    %v421 = vunpack.c.l.b16 %v140
    %v422 = vunpack.c.l.b16 %v141
    %v423 = vunpack.c.l.b16 %v142
    %v424 = vunpack.c.l.b16 %v143
    %v425 = vunpack.c.l.b16 %v144
    %v426 = vunpack.c.l.b16 %v145
    %v427 = vunpack.c.l.b16 %v146
    %v428 = vunpack.c.l.b16 %v147
    %v429 = vunpack.c.l.b16 %v148
    %v430 = vunpack.c.l.b16 %v149
    %v431 = vunpack.c.l.b16 %v150
    %v432 = vunpack.c.l.b16 %v151
    %v433 = vunpack.c.l.b16 %v152
    %v434 = vunpack.c.l.b16 %v153
    %v435 = vunpack.c.l.b16 %v154
    %v436 = vunpack.c.l.b16 %v155
    %v437 = vunpack.c.l.b16 %v156
    %v438 = vunpack.c.l.b16 %v157
    %v439 = vunpack.c.l.b16 %v158
    %v440 = vunpack.c.l.b16 %v159
    %v441 = vunpack.c.l.b16 %v160
    %v442 = vunpack.c.l.b16 %v161
    %v443 = vunpack.c.l.b16 %v162
    %v444 = vunpack.c.l.b16 %v163
    %v445 = vunpack.c.l.b16 %v164
    %v446 = vunpack.c.l.b16 %v165
    %v447 = vunpack.c.l.b16 %v166
    %v448 = vunpack.c.l.b16 %v167
    %v449 = vunpack.c.l.b16 %v168
    %v450 = vunpack.c.l.b16 %v169
    %v451 = vunpack.c.l.b16 %v170
    %v452 = vpack.c.b16 %v325, %v324
    %v453 = vpack.c.b16 %v327, %v326
    %v454 = vpack.c.b16 %v329, %v328
    %v455 = vpack.c.b16 %v331, %v330
    %v456 = vpack.c.b16 %v333, %v332
    %v457 = vpack.c.b16 %v335, %v334
    %v458 = vpack.c.b16 %v337, %v336
    %v459 = vpack.c.b16 %v339, %v338
    %v460 = vpack.c.b16 %v341, %v340
    %v461 = vpack.c.b16 %v343, %v342
    %v462 = vpack.c.b16 %v345, %v344
    %v463 = vpack.c.b16 %v347, %v346
    %v464 = vpack.c.b16 %v349, %v348
    %v465 = vpack.c.b16 %v351, %v350
    %v466 = vpack.c.b16 %v353, %v352
    %v467 = vpack.c.b16 %v355, %v354
    %v468 = vpack.c.b16 %v357, %v356
    %v469 = vpack.c.b16 %v359, %v358
    %v470 = vpack.c.b16 %v361, %v360
    %v471 = vpack.c.b16 %v363, %v362
    %v472 = vpack.c.b16 %v365, %v364
    %v473 = vpack.c.b16 %v367, %v366
    %v474 = vpack.c.b16 %v369, %v368
    %v475 = vpack.c.b16 %v371, %v370
    %v476 = vpack.c.b16 %v373, %v372
    %v477 = vpack.c.b16 %v375, %v374
    %v478 = vpack.c.b16 %v377, %v376
    %v479 = vpack.c.b16 %v379, %v378
    %v480 = vpack.c.b16 %v381, %v380
    %v481 = vpack.c.b16 %v383, %v382
    %v482 = vpack.c.b16 %v385, %v384
    %v483 = vpack.c.b16 %v387, %v386
    %v484 = vpack.c.b16 %v389, %v388
    %v485 = vpack.c.b16 %v391, %v390
    %v486 = vpack.c.b16 %v393, %v392
    %v487 = vpack.c.b16 %v395, %v394
    %v488 = vpack.c.b16 %v397, %v396
    %v489 = vpack.c.b16 %v399, %v398
    %v490 = vpack.c.b16 %v401, %v400
    %v491 = vpack.c.b16 %v403, %v402
    %v492 = vpack.c.b16 %v405, %v404
    %v493 = vpack.c.b16 %v407, %v406
    %v494 = vpack.c.b16 %v409, %v408
    %v495 = vpack.c.b16 %v411, %v410
    %v496 = vpack.c.b16 %v413, %v412
    %v497 = vpack.c.b16 %v415, %v414
    %v498 = vpack.c.b16 %v417, %v416
    %v499 = vpack.c.b16 %v419, %v418
    %v500 = vpack.c.b16 %v421, %v420
    %v501 = vpack.c.b16 %v423, %v422
    %v502 = vpack.c.b16 %v425, %v424
    %v503 = vpack.c.b16 %v427, %v426
    %v504 = vpack.c.b16 %v429, %v428
    %v505 = vpack.c.b16 %v431, %v430
    %v506 = vpack.c.b16 %v433, %v432
    %v507 = vpack.c.b16 %v435, %v434
    %v508 = vpack.c.b16 %v437, %v436
    %v509 = vpack.c.b16 %v439, %v438
    %v510 = vpack.c.b16 %v441, %v440
    %v511 = vpack.c.b16 %v443, %v442
    %v512 = vpack.c.b16 %v445, %v444
    %v513 = vpack.c.b16 %v447, %v446
    %v514 = vpack.c.b16 %v449, %v448
    %v515 = vpack.c.b16 %v451, %v450
    %580 = vmatpush.bf16.msra.mxu0 %v459
    %581 = vmatpush.bf16.msra.mxu0 %v458
    %582 = vmatpush.bf16.msra.mxu0 %v457
    %583 = vmatpush.bf16.msra.mxu0 %v456
    %584 = vmatpush.bf16.msra.mxu0 %v455
    %585 = vmatpush.bf16.msra.mxu0 %v454
    %586 = vmatpush.bf16.msra.mxu0 %v453
    %587 = vmatpush.bf16.msra.mxu0 %v452
    %588 = vmatmul.bf16.gmra.mxu0 %v180
    %v589 = vpop.f32.mrf.mxu0
    %v590 = vadd.f32 %v173, %v589
    %v591 = vpop.f32.mrf.mxu0
    %592 = vdwg.mxu0
    %593 = vmatpush.bf16.msra.mxu0 %v467
    %594 = vmatpush.bf16.msra.mxu0 %v466
    %595 = vmatpush.bf16.msra.mxu0 %v465
    %596 = vmatpush.bf16.msra.mxu0 %v464
    %597 = vmatpush.bf16.msra.mxu0 %v463
    %598 = vmatpush.bf16.msra.mxu0 %v462
    %599 = vmatpush.bf16.msra.mxu0 %v461
    %600 = vmatpush.bf16.msra.mxu0 %v460
    %601 = vmatmul.bf16.gmra.mxu0 %v181
    %v602 = vpop.f32.mrf.mxu0
    %v603 = vadd.f32 %v590, %v602
    %v604 = vpop.f32.mrf.mxu0
    %605 = vdwg.mxu0
    %606 = vmatpush.bf16.msra.mxu0 %v475
    %607 = vmatpush.bf16.msra.mxu0 %v474
    %608 = vmatpush.bf16.msra.mxu0 %v473
    %609 = vmatpush.bf16.msra.mxu0 %v472
    %610 = vmatpush.bf16.msra.mxu0 %v471
    %611 = vmatpush.bf16.msra.mxu0 %v470
    %612 = vmatpush.bf16.msra.mxu0 %v469
    %613 = vmatpush.bf16.msra.mxu0 %v468
    %614 = vmatmul.bf16.gmra.mxu0 %v182
    %v615 = vpop.f32.mrf.mxu0
    %v616 = vadd.f32 %v603, %v615
    %v617 = vpop.f32.mrf.mxu0
    %618 = vdwg.mxu0
    %619 = vmatpush.bf16.msra.mxu0 %v483
    %620 = vmatpush.bf16.msra.mxu0 %v482
    %621 = vmatpush.bf16.msra.mxu0 %v481
    %622 = vmatpush.bf16.msra.mxu0 %v480
    %623 = vmatpush.bf16.msra.mxu0 %v479
    %624 = vmatpush.bf16.msra.mxu0 %v478
    %625 = vmatpush.bf16.msra.mxu0 %v477
    %626 = vmatpush.bf16.msra.mxu0 %v476
    %627 = vmatmul.bf16.gmra.mxu0 %v183
    %v628 = vpop.f32.mrf.mxu0
    %v629 = vadd.f32 %v616, %v628
    %v630 = vpop.f32.mrf.mxu0
    %631 = vdwg.mxu0
    %632 = vmatpush.bf16.msra.mxu0 %v491
    %633 = vmatpush.bf16.msra.mxu0 %v490
    %634 = vmatpush.bf16.msra.mxu0 %v489
    %635 = vmatpush.bf16.msra.mxu0 %v488
    %636 = vmatpush.bf16.msra.mxu0 %v487
    %637 = vmatpush.bf16.msra.mxu0 %v486
    %638 = vmatpush.bf16.msra.mxu0 %v485
    %639 = vmatpush.bf16.msra.mxu0 %v484
    %640 = vmatmul.bf16.gmra.mxu0 %v184
    %v641 = vpop.f32.mrf.mxu0
    %v642 = vadd.f32 %v629, %v641
    %v643 = vpop.f32.mrf.mxu0
    %644 = vdwg.mxu0
    %645 = vmatpush.bf16.msra.mxu0 %v499
    %646 = vmatpush.bf16.msra.mxu0 %v498
    %647 = vmatpush.bf16.msra.mxu0 %v497
    %648 = vmatpush.bf16.msra.mxu0 %v496
    %649 = vmatpush.bf16.msra.mxu0 %v495
    %650 = vmatpush.bf16.msra.mxu0 %v494
    %651 = vmatpush.bf16.msra.mxu0 %v493
    %652 = vmatpush.bf16.msra.mxu0 %v492
    %653 = vmatmul.bf16.gmra.mxu0 %v185
    %v654 = vpop.f32.mrf.mxu0
    %v655 = vadd.f32 %v642, %v654
    %v656 = vpop.f32.mrf.mxu0
    %657 = vdwg.mxu0
    %658 = vmatpush.bf16.msra.mxu0 %v507
    %659 = vmatpush.bf16.msra.mxu0 %v506
    %660 = vmatpush.bf16.msra.mxu0 %v505
    %661 = vmatpush.bf16.msra.mxu0 %v504
    %662 = vmatpush.bf16.msra.mxu0 %v503
    %663 = vmatpush.bf16.msra.mxu0 %v502
    %664 = vmatpush.bf16.msra.mxu0 %v501
    %665 = vmatpush.bf16.msra.mxu0 %v500
    %666 = vmatmul.bf16.gmra.mxu0 %v186
    %v667 = vpop.f32.mrf.mxu0
    %v668 = vadd.f32 %v655, %v667
    %v669 = vpop.f32.mrf.mxu0
    %670 = vdwg.mxu0
    %671 = vmatpush.bf16.msra.mxu0 %v515
    %672 = vmatpush.bf16.msra.mxu0 %v514
    %673 = vmatpush.bf16.msra.mxu0 %v513
    %674 = vmatpush.bf16.msra.mxu0 %v512
    %675 = vmatpush.bf16.msra.mxu0 %v511
    %676 = vmatpush.bf16.msra.mxu0 %v510
    %677 = vmatpush.bf16.msra.mxu0 %v509
    %678 = vmatpush.bf16.msra.mxu0 %v508
    %679 = vmatmul.bf16.gmra.mxu0 %v187
    %v680 = vpop.f32.mrf.mxu0
    %v681 = vadd.f32 %v668, %v680
    %v682 = vpop.f32.mrf.mxu0
    %683 = vdwg.mxu0
    %v684 = vmax.f32 %v681, 0.0
    %v685 = vpack.c.bf16 %v684, %v684
    %v686 = vld [vmem:[%s4] sm:$0xf]
    %v687 = vld [vmem:[%s4 + $0x4] sm:$0xf]
    %v688 = vld [vmem:[%s4 + $0x8] sm:$0xf]
    %v689 = vld [vmem:[%s4 + $0xc] sm:$0xf]
    %v690 = vld [vmem:[%s4 + $0x10] sm:$0xf]
    %v691 = vld [vmem:[%s4 + $0x14] sm:$0xf]
    %v692 = vld [vmem:[%s4 + $0x18] sm:$0xf]
    %v693 = vld [vmem:[%s4 + $0x1c] sm:$0xf]
    %v694 = vld [vmem:[%s4 + $0x20] sm:$0xf]
    %v695 = vld [vmem:[%s4 + $0x24] sm:$0xf]
    %v696 = vld [vmem:[%s4 + $0x28] sm:$0xf]
    %v697 = vld [vmem:[%s4 + $0x2c] sm:$0xf]
    %v698 = vld [vmem:[%s4 + $0x30] sm:$0xf]
    %v699 = vld [vmem:[%s4 + $0x34] sm:$0xf]
    %v700 = vld [vmem:[%s4 + $0x38] sm:$0xf]
    %v701 = vld [vmem:[%s4 + $0x3c] sm:$0xf]
    %v702 = vld [vmem:[%s5] sm:$0x1]
    %v704 = vperm.slane %v702, 0
    %v722 = vunpack.c.l.b16 %v686
    %v723 = vunpack.c.l.b16 %v687
    %v724 = vunpack.c.l.b16 %v688
    %v725 = vunpack.c.l.b16 %v689
    %v726 = vunpack.c.l.b16 %v690
    %v727 = vunpack.c.l.b16 %v691
    %v728 = vunpack.c.l.b16 %v692
    %v729 = vunpack.c.l.b16 %v693
    %v730 = vunpack.c.l.b16 %v694
    %v731 = vunpack.c.l.b16 %v695
    %v732 = vunpack.c.l.b16 %v696
    %v733 = vunpack.c.l.b16 %v697
    %v734 = vunpack.c.l.b16 %v698
    %v735 = vunpack.c.l.b16 %v699
    %v736 = vunpack.c.l.b16 %v700
    %v737 = vunpack.c.l.b16 %v701
    %v738 = vpack.c.b16 %v723, %v722
    %v739 = vpack.c.b16 %v725, %v724
    %v740 = vpack.c.b16 %v727, %v726
    %v741 = vpack.c.b16 %v729, %v728
    %v742 = vpack.c.b16 %v731, %v730
    %v743 = vpack.c.b16 %v733, %v732
    %v744 = vpack.c.b16 %v735, %v734
    %v745 = vpack.c.b16 %v737, %v736
    %754 = vmatpush.bf16.msra.mxu0 %v745
    %755 = vmatpush.bf16.msra.mxu0 %v744
    %756 = vmatpush.bf16.msra.mxu0 %v743
    %757 = vmatpush.bf16.msra.mxu0 %v742
    %758 = vmatpush.bf16.msra.mxu0 %v741
    %759 = vmatpush.bf16.msra.mxu0 %v740
    %760 = vmatpush.bf16.msra.mxu0 %v739
    %761 = vmatpush.bf16.msra.mxu0 %v738
    %762 = vmatmul.bf16.gmra.mxu0 %v685
    %v763 = vpop.f32.mrf.mxu0
    %v764 = vadd.f32 %v704, %v763
    %v765 = vpop.f32.mrf.mxu0
    %766 = vdwg.mxu0
    %v767 = vmax.f32 %v764, 0.0
    %v768 = vpack.c.bf16 %v767, %v767
    %v769 = vld [vmem:[%s6] sm:$0xf]
    %v770 = vld [vmem:[%s6 + $0x4] sm:$0xf]
    %v771 = vld [vmem:[%s6 + $0x8] sm:$0xf]
    %v772 = vld [vmem:[%s6 + $0xc] sm:$0xf]
    %v773 = vld [vmem:[%s6 + $0x10] sm:$0xf]
    %v774 = vld [vmem:[%s6 + $0x14] sm:$0xf]
    %v775 = vld [vmem:[%s6 + $0x18] sm:$0xf]
    %v776 = vld [vmem:[%s6 + $0x1c] sm:$0xf]
    %v777 = vld [vmem:[%s6 + $0x20] sm:$0xf]
    %v778 = vld [vmem:[%s6 + $0x24] sm:$0xf]
    %v779 = vld [vmem:[%s6 + $0x28] sm:$0xf]
    %v780 = vld [vmem:[%s6 + $0x2c] sm:$0xf]
    %v781 = vld [vmem:[%s6 + $0x30] sm:$0xf]
    %v782 = vld [vmem:[%s6 + $0x34] sm:$0xf]
    %v783 = vld [vmem:[%s6 + $0x38] sm:$0xf]
    %v784 = vld [vmem:[%s6 + $0x3c] sm:$0xf]
    %v785 = vld [vmem:[%s7] sm:$0x1]
    %v787 = vperm.slane %v785, 0
    %v805 = vunpack.c.l.b16 %v769
    %v806 = vunpack.c.l.b16 %v770
    %v807 = vunpack.c.l.b16 %v771
    %v808 = vunpack.c.l.b16 %v772
    %v809 = vunpack.c.l.b16 %v773
    %v810 = vunpack.c.l.b16 %v774
    %v811 = vunpack.c.l.b16 %v775
    %v812 = vunpack.c.l.b16 %v776
    %v813 = vunpack.c.l.b16 %v777
    %v814 = vunpack.c.l.b16 %v778
    %v815 = vunpack.c.l.b16 %v779
    %v816 = vunpack.c.l.b16 %v780
    %v817 = vunpack.c.l.b16 %v781
    %v818 = vunpack.c.l.b16 %v782
    %v819 = vunpack.c.l.b16 %v783
    %v820 = vunpack.c.l.b16 %v784
    %v821 = vpack.c.b16 %v806, %v805
    %v822 = vpack.c.b16 %v808, %v807
    %v823 = vpack.c.b16 %v810, %v809
    %v824 = vpack.c.b16 %v812, %v811
    %v825 = vpack.c.b16 %v814, %v813
    %v826 = vpack.c.b16 %v816, %v815
    %v827 = vpack.c.b16 %v818, %v817
    %v828 = vpack.c.b16 %v820, %v819
    %837 = vmatpush.bf16.msra.mxu0 %v828
    %838 = vmatpush.bf16.msra.mxu0 %v827
    %839 = vmatpush.bf16.msra.mxu0 %v826
    %840 = vmatpush.bf16.msra.mxu0 %v825
    %841 = vmatpush.bf16.msra.mxu0 %v824
    %842 = vmatpush.bf16.msra.mxu0 %v823
    %843 = vmatpush.bf16.msra.mxu0 %v822
    %844 = vmatpush.bf16.msra.mxu0 %v821
    %845 = vmatmul.bf16.gmra.mxu0 %v768
    %v846 = vpop.f32.mrf.mxu0
    %v847 = vadd.f32 %v787, %v846
    %v848 = vpop.f32.mrf.mxu0
    %849 = vdwg.mxu0
    %vm850 = vcmask 60418
    %v851 = vsel %vm850, %v847, -inf
    %852 = vmax.xlane.f32.xlu0 %v851
    %v853 = vpop.xlane.xlu0 %852
    %v854 = vsub.f32 %v847, %v853
    %v855 = vmul.f32 %v854, 1.442695
    %v856 = vpow.pop %v855
    %v857 = vsel %vm850, %v856, 0.0
    %858 = vadd.xlane.f32.xlu0 %v857
    %v859 = vpop.xlane.xlu0 %858
    %v860 = vlog2.pop %v859
    %v861 = vmul.f32 %v860, 0.6931472
    %v862 = vadd.f32 %v861, %v853
    %v863 = vsub.f32 %v853, %v862
    %v864 = vmul.f32 %v863, 1.442695
    %v865 = vpow.pop %v864
    %vm866 = vcmask 3074
    %867 = vst.msk [vmem:[%s10 - $0x2] sm:$0xc] %vm866, %v865
    %v868 = vlaneseq
    %v869 = vand.u32 %v868, 127
    %vm870 = vcmp.ge.f32.partialorder %v847, %v853
    %v871 = vsel %vm870, %v869, 8
    %v872 = vsel %vm850, %v871, 2147483647
    %v873 = vand.u32 %v872, 65535
    %v874 = vshra.s32 %v872, 16
    %v875 = vcvt.s32.f32 %v873
    %v876 = vcvt.s32.f32 %v874
    %877 = vmin.xlane.f32.xlu0 %v876
    %v878 = vpop.xlane.xlu0 %877
    %vm879 = vcmp.eq.f32.partialorder %v876, %v878
    %v880 = vsel %vm879, %v875, inf
    %881 = vmin.xlane.f32.xlu0 %v880
    %v882 = vpop.xlane.xlu0 %881
    %v883 = vcvt.f32.s32 %v882
    %v884 = vcvt.f32.s32 %v878
    %v885 = vshll.u32 %v884, 16
    %v886 = vadd.s32 %v885, %v883
    %887 = vst.msk [vmem:[%s11 - $0x2] sm:$0xc] %vm866, %v886
    %vm888 = vcmask 58368
    %v889 = vsel %vm888, %v847, -inf
    %890 = vmax.xlane.f32.xlu0 %v889
    %v891 = vpop.xlane.xlu0 %890
    %v892 = vsub.f32 %v847, %v891
    %v893 = vmul.f32 %v892, 1.442695
    %v894 = vpow.pop %v893
    %v895 = vsel %vm888, %v894, 0.0
    %896 = vadd.xlane.f32.xlu0 %v895
    %v897 = vpop.xlane.xlu0 %896
    %v898 = vlog2.pop %v897
    %v899 = vmul.f32 %v898, 0.6931472
    %v900 = vadd.f32 %v899, %v891
    %v901 = vsub.f32 %v847, %v900
    %s902 = sld [smem:[#allocation3]]
    %v903 = vstv %s902
    %vm904 = vcmp.eq.s32.totalorder %v869, %v903
    %v905 = vsel %vm904, %v901, 0.0
    %vm906 = vcmask 57344
    %v907 = vsel %vm906, %v905, 0.0
    %908 = vadd.xlane.f32.xlu0 %v907
    %v909 = vpop.xlane.xlu0 %908
    %v910 = vrot.slane %v909, 4
    %v911 = vadd.f32 %v909, %v910
    %v912 = vrot.slane %v911, 2
    %v913 = vadd.f32 %v911, %v912
    %v914 = vrot.slane %v913, 1
    %v915 = vadd.f32 %v913, %v914
    %s916 = vtos %v915
    %s917 = ssub.f32 0.0, %s916
    %s918 = sld [smem:[#allocation3 + $0x1]]
    %v919 = vstv %s918
    %vm920 = vcmp.eq.s32.totalorder %v869, %v919
    %v921 = vsel %vm920, %v901, 0.0
    %v923 = vrot.slane %v921, 1
    %v925 = vsel %vm906, %v923, 0.0
    %926 = vadd.xlane.f32.xlu0 %v925
    %v927 = vpop.xlane.xlu0 %926
    %v928 = vrot.slane %v927, 4
    %v929 = vadd.f32 %v927, %v928
    %v930 = vrot.slane %v929, 2
    %v931 = vadd.f32 %v929, %v930
    %v932 = vrot.slane %v931, 1
    %v933 = vadd.f32 %v931, %v932
    %s934 = vtos %v933
    %s935 = ssub.f32 %s917, %s934
    %v936 = vrcp.pop 2.0
    %v937 = vmul.f32 2.0, %v936
    %v938 = vsub.f32 1.0, %v937
    %v939 = vmul.f32 %v936, %v938
    %v940 = vadd.f32 %v936, %v939
    %vm941 = vweird.f32 %v936
    %v942 = vsel %vm941, %v936, %v940
    %s943 = vtos %v942
    %s944 = smul.f32 %s935, %s943
    %v945 = vmul.f32 %v767, %v767
    %vm946 = vcmask 1043456
    %v947 = vsel %vm946, %v945, 0.0
    %948 = vadd.xlane.f32.xlu0 %v947
    %v949 = vpop.xlane.xlu0 %948
    %950 = vmatpush.xpose.msra.mxu0 0.0
    %951 = vmatpush.xpose.msra.mxu0 0.0
    %952 = vmatpush.xpose.msra.mxu0 0.0
    %953 = vmatpush.xpose.msra.mxu0 0.0
    %954 = vmatpush.xpose.msra.mxu0 0.0
    %955 = vmatpush.xpose.msra.mxu0 0.0
    %956 = vmatpush.xpose.msra.mxu0 0.0
    %957 = vmatpush.xpose.msra.mxu0 0.0
    %958 = vmatpush.xpose.msra.mxu0 0.0
    %959 = vmatpush.xpose.msra.mxu0 0.0
    %960 = vmatpush.xpose.msra.mxu0 0.0
    %961 = vmatpush.xpose.msra.mxu0 0.0
    %962 = vmatpush.xpose.msra.mxu0 0.0
    %963 = vmatpush.xpose.msra.mxu0 0.0
    %964 = vmatpush.xpose.msra.mxu0 0.0
    %965 = vmatpush.xpose.msra.mxu0 %v945
    %966 = vmatmul.f32.gmra.mxu0 1.0
    %v967 = vpop.f32.mrf.mxu0
    %v968 = vadd.f32 0.0, %v967
    %969 = vdwg.mxu0
    %970 = vmatpush.xpose.msra.mxu0 0.0
    %971 = vmatpush.xpose.msra.mxu0 0.0
    %972 = vmatpush.xpose.msra.mxu0 0.0
    %973 = vmatpush.xpose.msra.mxu0 0.0
    %974 = vmatpush.xpose.msra.mxu0 0.0
    %975 = vmatpush.xpose.msra.mxu0 0.0
    %976 = vmatpush.xpose.msra.mxu0 0.0
    %977 = vmatpush.xpose.msra.mxu0 0.0
    %978 = vmatpush.xpose.msra.mxu0 0.0
    %979 = vmatpush.xpose.msra.mxu0 0.0
    %980 = vmatpush.xpose.msra.mxu0 0.0
    %981 = vmatpush.xpose.msra.mxu0 0.0
    %982 = vmatpush.xpose.msra.mxu0 0.0
    %983 = vmatpush.xpose.msra.mxu0 0.0
    %984 = vmatpush.xpose.msra.mxu0 0.0
    %985 = vmatpush.xpose.msra.mxu0 %v767
    %986 = vmatmul.f32.gmra.mxu0 %v767
    %v987 = vpop.f32.mrf.mxu0
    %v988 = vadd.f32 0.0, %v987
    %989 = vdwg.mxu0
    %v990 = vperm.slane %v968, 0
    %v991 = vadd.f32 %v949, %v990
    %v992 = vmul.f32 %v988, 2.0
    %v993 = vsub.f32 %v991, %v992
    %v994 = vmax.f32 %v993, 0.0
    %vm995 = vcmask 27648
    %v996 = vsel %vm995, %v994, 0.0
    %997 = vadd.xlane.f32.xlu0 %v996
    %v998 = vpop.xlane.xlu0 %997
    %v999 = vrot.slane %v998, 4
    %v1000 = vadd.f32 %v998, %v999
    %v1001 = vrot.slane %v1000, 2
    %v1002 = vadd.f32 %v1000, %v1001
    %v1003 = vrot.slane %v1002, 1
    %v1004 = vadd.f32 %v1002, %v1003
    %s1005 = vtos %v1004
    %v1006 = vrcp.pop 12.0
    %v1007 = vmul.f32 12.0, %v1006
    %v1008 = vsub.f32 1.0, %v1007
    %v1009 = vmul.f32 %v1006, %v1008
    %v1010 = vadd.f32 %v1006, %v1009
    %vm1011 = vweird.f32 %v1006
    %v1012 = vsel %vm1011, %v1006, %v1010
    %s1013 = vtos %v1012
    %s1014 = smul.f32 %s1005, %s1013
    %v1015 = vrcp.pop 4.0
    %v1016 = vmul.f32 4.0, %v1015
    %v1017 = vsub.f32 1.0, %v1016
    %v1018 = vmul.f32 %v1015, %v1017
    %v1019 = vadd.f32 %v1015, %v1018
    %vm1020 = vweird.f32 %v1015
    %v1021 = vsel %vm1020, %v1015, %v1019
    %s1022 = vtos %v1021
    %s1023 = smul.f32 %s1014, %s1022
    %v1024 = vsub.f32 0.0, %v994
    %v1025 = vstv %s1023
    %v1026 = vrcp.pop %v1025
    %v1027 = vmul.f32 %v1025, %v1026
    %v1028 = vsub.f32 1.0, %v1027
    %v1029 = vmul.f32 %v1026, %v1028
    %v1030 = vadd.f32 %v1026, %v1029
    %vm1031 = vweird.f32 %v1025
    %vm1032 = vweird.f32 %v1026
    %vm1033 = vmor %vm1031, %vm1032
    %v1034 = vsel %vm1033, %v1026, %v1030
    %v1035 = vand.u32 2147483647, %v1025
    %vm1036 = vcmp.eq.f32.partialorder %v1035, 8.507059e+37
    %v1037 = vand.u32 %v1025, 2147483648
    %v1038 = vor.u32 1.1754944e-38, %v1037
    %v1039 = vsel %vm1036, %v1038, %v1034
    %v1040 = vmul.f32 %v1024, %v1039
    %v1041 = vmul.f32 %v1040, 1.442695
    %v1042 = vpow.pop %v1041
    %v1043 = vadd.f32 %v1042, 0.0
    %s1044 = smul.f32 %s1023, 2.0
    %v1045 = vstv %s1044
    %v1046 = vrcp.pop %v1045
    %v1047 = vmul.f32 %v1045, %v1046
    %v1048 = vsub.f32 1.0, %v1047
    %v1049 = vmul.f32 %v1046, %v1048
    %v1050 = vadd.f32 %v1046, %v1049
    %vm1051 = vweird.f32 %v1045
    %vm1052 = vweird.f32 %v1046
    %vm1053 = vmor %vm1051, %vm1052
    %v1054 = vsel %vm1053, %v1046, %v1050
    %v1055 = vand.u32 2147483647, %v1045
    %vm1056 = vcmp.eq.f32.partialorder %v1055, 8.507059e+37
    %v1057 = vand.u32 %v1045, 2147483648
    %v1058 = vor.u32 1.1754944e-38, %v1057
    %v1059 = vsel %vm1056, %v1058, %v1054
    %v1060 = vmul.f32 %v1024, %v1059
    %v1061 = vmul.f32 %v1060, 1.442695
    %v1062 = vpow.pop %v1061
    %v1063 = vadd.f32 %v1043, %v1062
    %s1064 = smul.f32 %s1023, 4.0
    %v1065 = vstv %s1064
    %v1066 = vrcp.pop %v1065
    %v1067 = vmul.f32 %v1065, %v1066
    %v1068 = vsub.f32 1.0, %v1067
    %v1069 = vmul.f32 %v1066, %v1068
    %v1070 = vadd.f32 %v1066, %v1069
    %vm1071 = vweird.f32 %v1065
    %vm1072 = vweird.f32 %v1066
    %vm1073 = vmor %vm1071, %vm1072
    %v1074 = vsel %vm1073, %v1066, %v1070
    %v1075 = vand.u32 2147483647, %v1065
    %vm1076 = vcmp.eq.f32.partialorder %v1075, 8.507059e+37
    %v1077 = vand.u32 %v1065, 2147483648
    %v1078 = vor.u32 1.1754944e-38, %v1077
    %v1079 = vsel %vm1076, %v1078, %v1074
    %v1080 = vmul.f32 %v1024, %v1079
    %v1081 = vmul.f32 %v1080, 1.442695
    %v1082 = vpow.pop %v1081
    %v1083 = vadd.f32 %v1063, %v1082
    %s1084 = smul.f32 %s1023, 8.0
    %v1085 = vstv %s1084
    %v1086 = vrcp.pop %v1085
    %v1087 = vmul.f32 %v1085, %v1086
    %v1088 = vsub.f32 1.0, %v1087
    %v1089 = vmul.f32 %v1086, %v1088
    %v1090 = vadd.f32 %v1086, %v1089
    %vm1091 = vweird.f32 %v1085
    %vm1092 = vweird.f32 %v1086
    %vm1093 = vmor %vm1091, %vm1092
    %v1094 = vsel %vm1093, %v1086, %v1090
    %v1095 = vand.u32 2147483647, %v1085
    %vm1096 = vcmp.eq.f32.partialorder %v1095, 8.507059e+37
    %v1097 = vand.u32 %v1085, 2147483648
    %v1098 = vor.u32 1.1754944e-38, %v1097
    %v1099 = vsel %vm1096, %v1098, %v1094
    %v1100 = vmul.f32 %v1024, %v1099
    %v1101 = vmul.f32 %v1100, 1.442695
    %v1102 = vpow.pop %v1101
    %v1103 = vadd.f32 %v1083, %v1102
    %s1104 = smul.f32 %s1023, 16.0
    %v1105 = vstv %s1104
    %v1106 = vrcp.pop %v1105
    %v1107 = vmul.f32 %v1105, %v1106
    %v1108 = vsub.f32 1.0, %v1107
    %v1109 = vmul.f32 %v1106, %v1108
    %v1110 = vadd.f32 %v1106, %v1109
    %vm1111 = vweird.f32 %v1105
    %vm1112 = vweird.f32 %v1106
    %vm1113 = vmor %vm1111, %vm1112
    %v1114 = vsel %vm1113, %v1106, %v1110
    %v1115 = vand.u32 2147483647, %v1105
    %vm1116 = vcmp.eq.f32.partialorder %v1115, 8.507059e+37
    %v1117 = vand.u32 %v1105, 2147483648
    %v1118 = vor.u32 1.1754944e-38, %v1117
    %v1119 = vsel %vm1116, %v1118, %v1114
    %v1120 = vmul.f32 %v1024, %v1119
    %v1121 = vmul.f32 %v1120, 1.442695
    %v1122 = vpow.pop %v1121
    %v1123 = vadd.f32 %v1103, %v1122
    %vm1124 = vcmask 9216
    %v1125 = vsel %vm1124, %v1123, 0.0
    %1126 = vadd.xlane.f32.xlu0 %v1125
    %v1127 = vpop.xlane.xlu0 %1126
    %v1128 = vrot.slane %v1127, 4
    %v1129 = vadd.f32 %v1127, %v1128
    %v1130 = vrot.slane %v1129, 2
    %v1131 = vadd.f32 %v1129, %v1130
    %v1132 = vrot.slane %v1131, 1
    %v1133 = vadd.f32 %v1131, %v1132
    %s1134 = vtos %v1133
    %v1135 = vrcp.pop 4.0
    %v1136 = vmul.f32 4.0, %v1135
    %v1137 = vsub.f32 1.0, %v1136
    %v1138 = vmul.f32 %v1135, %v1137
    %v1139 = vadd.f32 %v1135, %v1138
    %vm1140 = vweird.f32 %v1135
    %v1141 = vsel %vm1140, %v1135, %v1139
    %s1142 = vtos %v1141
    %s1143 = smul.f32 %s1134, %s1142
    %v1145 = vrot.slane %v1123, 2
    %1146 = vrot.lane.b32.xlu0 %v1145, 126
    %v1147 = vpop.permute.xlu0 %1146
    %v1149 = vsel %vm1124, %v1147, 0.0
    %1150 = vadd.xlane.f32.xlu0 %v1149
    %v1151 = vpop.xlane.xlu0 %1150
    %v1152 = vrot.slane %v1151, 4
    %v1153 = vadd.f32 %v1151, %v1152
    %v1154 = vrot.slane %v1153, 2
    %v1155 = vadd.f32 %v1153, %v1154
    %v1156 = vrot.slane %v1155, 1
    %v1157 = vadd.f32 %v1155, %v1156
    %s1158 = vtos %v1157
    %v1159 = vrcp.pop 4.0
    %v1160 = vmul.f32 4.0, %v1159
    %v1161 = vsub.f32 1.0, %v1160
    %v1162 = vmul.f32 %v1159, %v1161
    %v1163 = vadd.f32 %v1159, %v1162
    %vm1164 = vweird.f32 %v1159
    %v1165 = vsel %vm1164, %v1159, %v1163
    %s1166 = vtos %v1165
    %s1167 = smul.f32 %s1158, %s1166
    %s1168 = sadd.f32 %s1143, %s1167
    %1169 = vrot.lane.b32.xlu0 %v1123, 126
    %v1170 = vpop.permute.xlu0 %1169
    %v1172 = vsel %vm1124, %v1170, 0.0
    %1173 = vadd.xlane.f32.xlu0 %v1172
    %v1174 = vpop.xlane.xlu0 %1173
    %v1175 = vrot.slane %v1174, 4
    %v1176 = vadd.f32 %v1174, %v1175
    %v1177 = vrot.slane %v1176, 2
    %v1178 = vadd.f32 %v1176, %v1177
    %v1179 = vrot.slane %v1178, 1
    %v1180 = vadd.f32 %v1178, %v1179
    %s1181 = vtos %v1180
    %v1182 = vrcp.pop 4.0
    %v1183 = vmul.f32 4.0, %v1182
    %v1184 = vsub.f32 1.0, %v1183
    %v1185 = vmul.f32 %v1182, %v1184
    %v1186 = vadd.f32 %v1182, %v1185
    %vm1187 = vweird.f32 %v1182
    %v1188 = vsel %vm1187, %v1182, %v1186
    %s1189 = vtos %v1188
    %s1190 = smul.f32 %s1181, %s1189
    %s1191 = ssub.f32 %s1168, %s1190
    %v1193 = vsel %vm1124, %v1145, 0.0
    %1194 = vadd.xlane.f32.xlu0 %v1193
    %v1195 = vpop.xlane.xlu0 %1194
    %v1196 = vrot.slane %v1195, 4
    %v1197 = vadd.f32 %v1195, %v1196
    %v1198 = vrot.slane %v1197, 2
    %v1199 = vadd.f32 %v1197, %v1198
    %v1200 = vrot.slane %v1199, 1
    %v1201 = vadd.f32 %v1199, %v1200
    %s1202 = vtos %v1201
    %v1203 = vrcp.pop 4.0
    %v1204 = vmul.f32 4.0, %v1203
    %v1205 = vsub.f32 1.0, %v1204
    %v1206 = vmul.f32 %v1203, %v1205
    %v1207 = vadd.f32 %v1203, %v1206
    %vm1208 = vweird.f32 %v1203
    %v1209 = vsel %vm1208, %v1203, %v1207
    %s1210 = vtos %v1209
    %s1211 = smul.f32 %s1202, %s1210
    %s1212 = ssub.f32 %s1191, %s1211
    %s1213 = sadd.f32 %s944, %s1212
    %v1214 = vstv %s1213
    %vm1215 = vcmask 0
    %1216 = vst.msk [vmem:[#allocation4] sm:$0x1] %vm1215, %v1214
    %1217 = vst [vmem:[#allocation6 - $0x2] sm:$0xc] %v684
    // Predicated region
    $region30: #{transfernet_forward.1} parent=1 // pred_check
      _
    $region31: #{transfernet_forward.1} parent=1 // pred_check_branch
      %1219 = sbr.rel (0) target = $region33
    $region32: #{transfernet_forward.1} parent=1 // pred_region
      %1221 = vsyncadd [#allocation5], 0
      %s1223 = sshll.u32 [#allocation4], 4
      %s1224 = int_to_ptr.vmem [resolvable:$true] %s1223
      %s1225 = sshll.u32 %s8, 4
      %s1226 = int_to_ptr.hbm [resolvable:$true] %s1225
      %1228 = dma.vmem_to_hbm [thread:$0]  %s1224, 16, %s1226, [#allocation5]
    $region33: #{transfernet_forward.1} parent=1 // pred_fallthru
      _
    // Predicated region
    $region34: #{transfernet_forward.1} parent=1 // pred_check
      _
    $region35: #{transfernet_forward.1} parent=1 // pred_check_branch
      %1230 = sbr.rel (0) target = $region37
    $region36: #{transfernet_forward.1} parent=1 // pred_region
      %1232 = vsyncadd [#allocation7], 0
      %s1234 = sshll.u32 [#allocation6], 4
      %s1235 = int_to_ptr.vmem [resolvable:$true] %s1234
      %s1236 = sshll.u32 %s9, 4
      %s1237 = int_to_ptr.hbm [resolvable:$true] %s1236
      %1239 = dma.vmem_to_hbm [thread:$0]  %s1235, 32, %s1237, [#allocation7]
    $region37: #{transfernet_forward.1} parent=1 // pred_fallthru
      _
    // Predicated region
    $region38: #{transfernet_forward.1} parent=1 // pred_check
      _
    $region39: #{transfernet_forward.1} parent=1 // pred_check_branch
      %1241 = sbr.rel (0) target = $region41
    $region40: #{transfernet_forward.1} parent=1 // pred_region
      _
    $region41: #{transfernet_forward.1} parent=1 // pred_fallthru
      _
    // Predicated region
    $region42: #{transfernet_forward.1} parent=1 // pred_check
      _
    $region43: #{transfernet_forward.1} parent=1 // pred_check_branch
      %1243 = sbr.rel (0) target = $region45
    $region44: #{transfernet_forward.1} parent=1 // pred_region
      _
    $region45: #{transfernet_forward.1} parent=1 // pred_fallthru
      _
    // Predicated region
    $region46: #{transfernet_forward.1} parent=1 // pred_check
      _
    $region47: #{transfernet_forward.1} parent=1 // pred_check_branch
      %1245 = sbr.rel (0) target = $region49
    $region48: #{transfernet_forward.1} parent=1 // pred_region
      %1247 = dma.done [#allocation5], 16
    $region49: #{transfernet_forward.1} parent=1 // pred_fallthru
      _
    // Predicated region
    $region50: #{transfernet_forward.1} parent=1 // pred_check
      _
    $region51: #{transfernet_forward.1} parent=1 // pred_check_branch
      %1249 = sbr.rel (0) target = $region53
    $region52: #{transfernet_forward.1} parent=1 // pred_region
      %1251 = dma.done [#allocation7], 32
    $region53: #{transfernet_forward.1} parent=1 // pred_fallthru
      _
    // Predicated region
    $region54: #{transfernet_forward.1} parent=1 // pred_check
      _
    $region55: #{transfernet_forward.1} parent=1 // pred_check_branch
      %1253 = sbr.rel (0) target = $region57
    $region56: #{transfernet_forward.1} parent=1 // pred_region
      _
    $region57: #{transfernet_forward.1} parent=1 // pred_fallthru
      _
    // Predicated region
    $region58: #{transfernet_forward.1} parent=1 // pred_check
      _
    $region59: #{transfernet_forward.1} parent=1 // pred_check_branch
      %1255 = sbr.rel (0) target = $region61
    $region60: #{transfernet_forward.1} parent=1 // pred_region
      _
    $region61: #{transfernet_forward.1} parent=1 // pred_fallthru
      _
    %1256 = vsyncpa [#allocation5], 1
    %1257 = vsyncpa [#allocation7], 1

</llo_original>
